<compile_context>
chip_gen: v6e
topology: v6e:2x2x1
jax: 0.10.0
libtpu: 0.0.40
codegen_flags: <defaults>
</compile_context>

<pallas_src>
import functools
import math

import jax
import jax.numpy as jnp
from jax import lax
from jax.experimental import pallas as pl
from jax.experimental.pallas import tpu as pltpu


def _round_up(x, m):
    return ((x + m - 1) // m) * m


_SQRT_2_OVER_PI = math.sqrt(2.0 / math.pi)
_INV_SQRT_2 = 1.0 / math.sqrt(2.0)


def _gelu(x, exact):
    if exact:
        # torch.nn.GELU default (exact erf) — VALU polynomial, keep only if
        # bit-level parity with PyTorch is required.
        return 0.5 * x * (1.0 + lax.erf(x * _INV_SQRT_2))
    # tanh approximation: the transcendental goes to the EUP slot (free filler
    # next to the MXU on v6e/v7x).
    return 0.5 * x * (1.0 + jnp.tanh(_SQRT_2_OVER_PI * (x + 0.044715 * (x * x * x))))


def _mlp_kernel(x_ref, w1_ref, b1_ref, w2_ref, b2_ref, o_ref, acc_ref, *, gelu_exact):
    h_idx = pl.program_id(1)

    @pl.when(h_idx == 0)
    def _():
        acc_ref[...] = jnp.zeros_like(acc_ref)

    # In-register f32 -> bf16 cast (no wrapper-side cast pass over x in HBM).
    x_bf = x_ref[...].astype(jnp.bfloat16)
    h = jnp.dot(x_bf, w1_ref[...], preferred_element_type=jnp.float32)
    h = _gelu(h + b1_ref[...], gelu_exact)                    # f32 bias + GELU
    acc_ref[...] += jnp.dot(h.astype(jnp.bfloat16), w2_ref[...],
                            preferred_element_type=jnp.float32)

    @pl.when(h_idx == pl.num_programs(1) - 1)
    def _():
        o_ref[...] = (acc_ref[...] + b2_ref[...]).astype(o_ref.dtype)


def _vmem_budget_bytes():
    """~75% of physical VMEM per core; conservative 48 MiB fallback (v7x-safe)."""
    cap = None
    try:
        cap = getattr(pltpu.get_tpu_info(), "vmem_capacity_bytes", None)
    except Exception:
        cap = None
    if not cap:
        cap = 64 * 1024 * 1024
    return int(cap) * 3 // 4


def _choose_tiles(tm_req, C_in, hidden128, C_out_p, out_bytes, vmem_budget):
    """Pick (tm, th) so the working set fits the VMEM budget."""
    def vmem_use(tm, th):
        weights = 2 * (C_in * th + th * C_out_p) * 2        # bf16 W1/W2 blocks, 2 bufs
        biases = 2 * (th + C_out_p) * 4                     # f32 b1/b2 blocks, 2 bufs
        stream = 2 * tm * C_in * 4 + 2 * tm * C_out_p * out_bytes   # x in / out tiles
        acc = tm * C_out_p * 4                              # f32 accumulator scratch
        inter = tm * th * 6                                 # f32 h + bf16 copy of h
        return weights + biases + stream + acc + inter

    tm = max(128, _round_up(tm_req, 128))
    while True:
        th = hidden128
        nh = 1
        while vmem_use(tm, th) > vmem_budget and th > 128:
            nh += 1
            th = _round_up(pl.cdiv(hidden128, nh), 128)
        if vmem_use(tm, th) <= vmem_budget or tm <= 128:
            return tm, th
        tm = max(128, _round_up(tm // 2, 128))


def prepare_mlp_params(w1, b1, w2, b2, *, tm=512, gelu_exact=False):
    """One-time parameter prep: bf16 cast + padding + tile selection.

    w1: (in, hidden), b1: (hidden,), w2: (hidden, out), b2: (out,)  (x @ W layout).
    """
    C_in, hidden = w1.shape
    C_out = w2.shape[1]

    C_out_p = _round_up(C_out, 128)            # lane-dense output stores
    hidden128 = _round_up(hidden, 128)

    vmem_budget = _vmem_budget_bytes()
    tm_sel, th = _choose_tiles(tm, C_in, hidden128, C_out_p, 4, vmem_budget)
    nh = pl.cdiv(hidden128, th)
    hidden_pad = th * nh

    # Zero padding is exact: padded hidden units give gelu(0)=0 and multiply
    # zero W2 rows; padded output columns are sliced off.
    w1b = jnp.pad(w1.astype(jnp.bfloat16), ((0, 0), (0, hidden_pad - hidden)))
    b1p = jnp.pad(b1.astype(jnp.float32).reshape(1, hidden),
                  ((0, 0), (0, hidden_pad - hidden)))
    w2b = jnp.pad(w2.astype(jnp.bfloat16),
                  ((0, hidden_pad - hidden), (0, C_out_p - C_out)))
    b2p = jnp.pad(b2.astype(jnp.float32).reshape(1, C_out),
                  ((0, 0), (0, C_out_p - C_out)))

    meta = dict(C_in=C_in, hidden=hidden, hidden_pad=hidden_pad,
                C_out=C_out, C_out_p=C_out_p,
                tm=tm_sel, th=th, nh=nh,
                vmem_limit=vmem_budget, gelu_exact=gelu_exact)
    return dict(w1=w1b, b1=b1p, w2=w2b, b2=b2p, meta=meta)


def mlp_pallas(x, params):
    """x: (..., C_in) -> (..., C_out) using prepared params."""
    meta = params["meta"]
    C_in, C_out, C_out_p = meta["C_in"], meta["C_out"], meta["C_out_p"]
    hidden_pad, th, nh = meta["hidden_pad"], meta["th"], meta["nh"]

    lead = x.shape[:-1]
    assert x.shape[-1] == C_in
    M = 1
    for d in lead:
        M *= d
    x2 = x.reshape(M, C_in)                    # no cast, no pad: ragged grid + in-kernel cast

    tm = min(meta["tm"], max(128, _round_up(M, 128)))
    grid_m = pl.cdiv(M, tm)
    out_dtype = x.dtype

    kernel = functools.partial(_mlp_kernel, gelu_exact=meta["gelu_exact"])

    flops = 2 * grid_m * tm * hidden_pad * (C_in + C_out_p)
    bytes_accessed = (M * C_in * jnp.dtype(x2.dtype).itemsize
                      + (C_in * hidden_pad + hidden_pad * C_out_p) * 2
                      + (hidden_pad + C_out_p) * 4
                      + M * C_out_p * jnp.dtype(out_dtype).itemsize)

    out2 = pl.pallas_call(
        kernel,
        out_shape=jax.ShapeDtypeStruct((M, C_out_p), out_dtype),
        grid_spec=pltpu.PrefetchScalarGridSpec(
            num_scalar_prefetch=0,
            grid=(grid_m, nh),                                     # reduction axis last
            in_specs=[
                pl.BlockSpec((tm, C_in), lambda i, h: (i, 0)),     # x row tile (orig dtype)
                pl.BlockSpec((C_in, th), lambda i, h: (0, h)),     # W1 hidden chunk (bf16)
                pl.BlockSpec((1, th), lambda i, h: (0, h)),        # b1 chunk (f32)
                pl.BlockSpec((th, C_out_p), lambda i, h: (h, 0)),  # W2 hidden chunk (bf16)
                pl.BlockSpec((1, C_out_p), lambda i, h: (0, 0)),   # b2 (f32)
            ],
            out_specs=pl.BlockSpec((tm, C_out_p), lambda i, h: (i, 0)),
            scratch_shapes=[pltpu.VMEM((tm, C_out_p), jnp.float32)],
        ),
        compiler_params=pltpu.CompilerParams(
            dimension_semantics=("parallel", "arbitrary"),
            vmem_limit_bytes=meta["vmem_limit"],
        ),
        cost_estimate=pl.CostEstimate(
            flops=int(flops),
            transcendentals=int(grid_m * tm * hidden_pad),
            bytes_accessed=int(bytes_accessed),
        ),
    )(x2, params["w1"], params["b1"], params["w2"], params["b2"])

    return out2[:, :C_out].reshape(*lead, C_out)


def mlp_reference(x, w1, b1, w2, b2, *, gelu_exact=False):
    # Same numerics as the kernel (bf16 MXU operands, f32 accumulation, same GELU)
    # so the comparison isolates kernel correctness from bf16 rounding.
    x2 = x.reshape(-1, x.shape[-1])
    h = jnp.dot(x2.astype(jnp.bfloat16), w1.astype(jnp.bfloat16),
                preferred_element_type=jnp.float32) + b1.astype(jnp.float32)
    h = _gelu(h, gelu_exact)
    o = jnp.dot(h.astype(jnp.bfloat16), w2.astype(jnp.bfloat16),
                preferred_element_type=jnp.float32) + b2.astype(jnp.float32)
    return o.reshape(*x.shape[:-1], w2.shape[1]).astype(x.dtype)


def _init_linear(key, fan_in, fan_out, dtype=jnp.float32):
    # Mimics torch.nn.Linear defaults (uniform +/- 1/sqrt(fan_in)),
    # stored transposed so the kernel computes x @ W.
    kw, kb = jax.random.split(key)
    bound = 1.0 / math.sqrt(fan_in)
    w = jax.random.uniform(kw, (fan_in, fan_out), dtype, -bound, bound)
    b = jax.random.uniform(kb, (fan_out,), dtype, -bound, bound)
    return w, b


if __name__ == "__main__":
    # Small shapes consistent with the module's (B, N, C) token layout.
    B, N = 2, 256
    in_features, hidden_features, out_features = 128, 256, 128

    key = jax.random.PRNGKey(0)
    kx, k1, k2 = jax.random.split(key, 3)

    x = jax.random.normal(kx, (B, N, in_features), jnp.float32)
    w1, b1 = _init_linear(k1, in_features, hidden_features)
    w2, b2 = _init_linear(k2, hidden_features, out_features)

    params = prepare_mlp_params(w1, b1, w2, b2, tm=512, gelu_exact=False)
    out = mlp_pallas(x, params)
    out = jax.block_until_ready(out)

    ref = mlp_reference(x, w1, b1, w2, b2, gelu_exact=False)
    assert out.shape == (B, N, out_features)
    max_err = float(jnp.max(jnp.abs(out - ref)))
    assert jnp.allclose(out, ref, atol=5e-3, rtol=5e-3), (
        f"mismatch vs reference (max abs err {max_err})")

    print("KERNEL_OK")
</pallas_src>

<mosaic_0001>
module attributes {stable_mosaic.version = 11 : i64} {
  func.func @_mlp_kernel(%arg0: i32, %arg1: i32, %arg2: memref<512x128xf32, #tpu.memory_space<vmem>>, %arg3: memref<128x256xbf16, #tpu.memory_space<vmem>>, %arg4: memref<1x256xf32, #tpu.memory_space<vmem>>, %arg5: memref<256x128xbf16, #tpu.memory_space<vmem>>, %arg6: memref<1x128xf32, #tpu.memory_space<vmem>>, %arg7: memref<512x128xf32, #tpu.memory_space<vmem>>, %arg8: memref<512x128xf32, #tpu.memory_space<vmem>>) attributes {dimension_semantics = [#tpu.dimension_semantics<parallel>, #tpu.dimension_semantics<arbitrary>], iteration_bounds = array<i64: 1, 1>, scalar_prefetch = 0 : i64, scratch_operands = 1 : i64, tpu.core_type = #tpu.core_type<tc>, window_params = [{transform_indices = @transform_0, window_bounds = array<i64: 512, 128>}, {transform_indices = @transform_1, window_bounds = array<i64: 128, 256>}, {transform_indices = @transform_2, window_bounds = array<i64: 1, 256>}, {transform_indices = @transform_3, window_bounds = array<i64: 256, 128>}, {pipeline_mode = #tpu.pipeline_mode<synchronous>, transform_indices = @transform_4, window_bounds = array<i64: 1, 128>}, {transform_indices = @transform_5, window_bounds = array<i64: 512, 128>}]} {
    %c0_i32 = arith.constant 0 : i32
    %0 = arith.cmpi eq, %arg1, %c0_i32 : i32
    %1 = arith.extui %0 : i1 to i32
    %c0_i32_0 = arith.constant 0 : i32
    %2 = arith.cmpi ne, %1, %c0_i32_0 : i32
    scf.if %2 {
      %cst_19 = arith.constant 0.000000e+00 : f32
      %32 = vector.broadcast %cst_19 : f32 to vector<512x128xf32>
      %c0_20 = arith.constant 0 : index
      %c0_21 = arith.constant 0 : index
      %33 = vector.load %arg8[%c0_20, %c0_21] : memref<512x128xf32, #tpu.memory_space<vmem>>, vector<512x128xf32>
      tpu.vector_store %arg8[%c0_20, %c0_21], %32 {strides = array<i32>} : memref<512x128xf32, #tpu.memory_space<vmem>>, vector<512x128xf32>,
    } else {
    }
    %c0 = arith.constant 0 : index
    %c0_1 = arith.constant 0 : index
    %3 = vector.load %arg2[%c0, %c0_1] : memref<512x128xf32, #tpu.memory_space<vmem>>, vector<512x128xf32>
    %4 = arith.truncf %3 : vector<512x128xf32> to vector<512x128xbf16>
    %c0_2 = arith.constant 0 : index
    %c0_3 = arith.constant 0 : index
    %5 = vector.load %arg3[%c0_2, %c0_3] : memref<128x256xbf16, #tpu.memory_space<vmem>>, vector<128x256xbf16>
    %cst = arith.constant dense<0.000000e+00> : vector<512x256xf32>
    %6 = tpu.matmul %4, %5, %cst {dimension_numbers = #tpu.dot_dimension_numbers<[1], [0], [0], [1], [0, 0, 1, 1], [], []>} : vector<512x128xbf16>, vector<128x256xbf16>, vector<512x256xf32> -> vector<512x256xf32>
    %c0_4 = arith.constant 0 : index
    %c0_5 = arith.constant 0 : index
    %7 = vector.load %arg4[%c0_4, %c0_5] : memref<1x256xf32, #tpu.memory_space<vmem>>, vector<1x256xf32>
    %8 = vector.broadcast %7 : vector<1x256xf32> to vector<512x256xf32>
    %9 = arith.addf %6, %8 : vector<512x256xf32>
    %cst_6 = arith.constant 5.000000e-01 : f32
    %10 = vector.broadcast %cst_6 : f32 to vector<512x256xf32>
    %11 = arith.mulf %10, %9 : vector<512x256xf32>
    %12 = arith.mulf %9, %9 : vector<512x256xf32>
    %13 = arith.mulf %12, %9 : vector<512x256xf32>
    %cst_7 = arith.constant 4.471500e-02 : f32
    %14 = vector.broadcast %cst_7 : f32 to vector<512x256xf32>
    %15 = arith.mulf %14, %13 : vector<512x256xf32>
    %16 = arith.addf %9, %15 : vector<512x256xf32>
    %cst_8 = arith.constant 0.797884583 : f32
    %17 = vector.broadcast %cst_8 : f32 to vector<512x256xf32>
    %18 = arith.mulf %17, %16 : vector<512x256xf32>
    %19 = math.tanh %18 : vector<512x256xf32>
    %cst_9 = arith.constant 1.000000e+00 : f32
    %20 = vector.broadcast %cst_9 : f32 to vector<512x256xf32>
    %21 = arith.addf %20, %19 : vector<512x256xf32>
    %22 = arith.mulf %11, %21 : vector<512x256xf32>
    %c0_10 = arith.constant 0 : index
    %c0_11 = arith.constant 0 : index
    %23 = vector.load %arg8[%c0_10, %c0_11] : memref<512x128xf32, #tpu.memory_space<vmem>>, vector<512x128xf32>
    %24 = arith.truncf %22 : vector<512x256xf32> to vector<512x256xbf16>
    %c0_12 = arith.constant 0 : index
    %c0_13 = arith.constant 0 : index
    %25 = vector.load %arg5[%c0_12, %c0_13] : memref<256x128xbf16, #tpu.memory_space<vmem>>, vector<256x128xbf16>
    %cst_14 = arith.constant dense<0.000000e+00> : vector<512x128xf32>
    %26 = tpu.matmul %24, %25, %cst_14 {dimension_numbers = #tpu.dot_dimension_numbers<[1], [0], [0], [1], [0, 0, 1, 1], [], []>} : vector<512x256xbf16>, vector<256x128xbf16>, vector<512x128xf32> -> vector<512x128xf32>
    %27 = arith.addf %23, %26 : vector<512x128xf32>
    %c0_15 = arith.constant 0 : index
    %c0_16 = arith.constant 0 : index
    %28 = vector.load %arg8[%c0_15, %c0_16] : memref<512x128xf32, #tpu.memory_space<vmem>>, vector<512x128xf32>
    tpu.vector_store %arg8[%c0_15, %c0_16], %27 {strides = array<i32>} : memref<512x128xf32, #tpu.memory_space<vmem>>, vector<512x128xf32>,
    %c0_i32_17 = arith.constant 0 : i32
    %29 = arith.cmpi eq, %arg1, %c0_i32_17 : i32
    %30 = arith.extui %29 : i1 to i32
    %c0_i32_18 = arith.constant 0 : i32
    %31 = arith.cmpi ne, %30, %c0_i32_18 : i32
    scf.if %31 {
      %c0_19 = arith.constant 0 : index
      %c0_20 = arith.constant 0 : index
      %32 = vector.load %arg8[%c0_19, %c0_20] : memref<512x128xf32, #tpu.memory_space<vmem>>, vector<512x128xf32>
      %c0_21 = arith.constant 0 : index
      %c0_22 = arith.constant 0 : index
      %33 = vector.load %arg6[%c0_21, %c0_22] : memref<1x128xf32, #tpu.memory_space<vmem>>, vector<1x128xf32>
      %34 = vector.broadcast %33 : vector<1x128xf32> to vector<512x128xf32>
      %35 = arith.addf %32, %34 : vector<512x128xf32>
      %c0_23 = arith.constant 0 : index
      %c0_24 = arith.constant 0 : index
      %36 = vector.load %arg7[%c0_23, %c0_24] : memref<512x128xf32, #tpu.memory_space<vmem>>, vector<512x128xf32>
      tpu.vector_store %arg7[%c0_23, %c0_24], %35 {strides = array<i32>} : memref<512x128xf32, #tpu.memory_space<vmem>>, vector<512x128xf32>,
    } else {
    }
    return
  }
  func.func @transform_0(%arg0: i32, %arg1: i32) -> (i32, i32) {
    %c0_i32 = arith.constant 0 : i32
    %c0_i32_0 = arith.constant 0 : i32
    return %arg0, %c0_i32 : i32, i32
  }
  func.func @transform_1(%arg0: i32, %arg1: i32) -> (i32, i32) {
    %c0_i32 = arith.constant 0 : i32
    %c0_i32_0 = arith.constant 0 : i32
    return %c0_i32, %arg1 : i32, i32
  }
  func.func @transform_2(%arg0: i32, %arg1: i32) -> (i32, i32) {
    %c0_i32 = arith.constant 0 : i32
    %c0_i32_0 = arith.constant 0 : i32
    return %c0_i32, %arg1 : i32, i32
  }
  func.func @transform_3(%arg0: i32, %arg1: i32) -> (i32, i32) {
    %c0_i32 = arith.constant 0 : i32
    %c0_i32_0 = arith.constant 0 : i32
    return %arg1, %c0_i32 : i32, i32
  }
  func.func @transform_4(%arg0: i32, %arg1: i32) -> (i32, i32) {
    %c0_i32 = arith.constant 0 : i32
    %c0_i32_0 = arith.constant 0 : i32
    %c0_i32_1 = arith.constant 0 : i32
    return %c0_i32, %c0_i32_0 : i32, i32
  }
  func.func @transform_5(%arg0: i32, %arg1: i32) -> (i32, i32) {
    %c0_i32 = arith.constant 0 : i32
    %c0_i32_0 = arith.constant 0 : i32
    return %arg0, %c0_i32 : i32, i32
  }
}

</mosaic_0001>

<llo_original>
// kernel: tpu_custom_call.1
$region0: #{tpu_custom_call.1}
  #allocation0 [shape = 'u32[]', space=smem, size = 0x4, offset = 0x4, fixed_abs, tag = 'smem constant byte address 0x4 - core index']
  #allocation1 [shape = 'u32[144,128]{1,0:T(1,128)}', space=vmem, size = 0x12000, scoped, tag = 'internal scratch']
  #allocation2 [shape = 'f32[512,128]{1,0:T(8,128)}', space=vmem, size = 0x40000, scoped, tag = 'scratch operand']
  %s0 = inlined_call_operand.hbm [shape: f32[512,128], index: 0, kind: input, shape index: {}]
  %s1 = inlined_call_operand.hbm [shape: bf16[128,256], index: 1, kind: input, shape index: {}]
  %s2 = inlined_call_operand.vmem [shape: f32[1,256], index: 2, kind: input, shape index: {}]
  %s3 = inlined_call_operand.hbm [shape: bf16[256,128], index: 3, kind: input, shape index: {}]
  %s4 = inlined_call_operand.vmem [shape: f32[1,128], index: 4, kind: input, shape index: {}]
  %s5 = inlined_call_operand.hbm [shape: f32[512,128], index: 5, kind: output, shape index: {}]
  %s6 = sld [smem:[#allocation0]]
  $region50: #{tpu_custom_call.1} parent=0
    _
  %s8 = ssub.s32 1, %s6
  %s9 = scalar_select 0, %s8, %s6
  $region1: #{tpu_custom_call.1} parent=0
    #allocation3 [shape = 'u8[262144]{0}', space=vmem, size = 0x40000, scoped, tag = 'input window, operand 0, single buffered']
    #allocation4 [shape = 's32[1]{0}', space=sflag, size = 0x4, scoped, tag = 'scoped memory for tpu_custom_call.1']
    #allocation5 [shape = 's32[1]{0}', space=sflag, size = 0x4, scoped, tag = 'scoped memory for tpu_custom_call.1']
    #allocation6 [shape = 'u8[65536]{0}', space=vmem, size = 0x10000, scoped, tag = 'input window, operand 1, single buffered']
    #allocation7 [shape = 's32[1]{0}', space=sflag, size = 0x4, scoped, tag = 'scoped memory for tpu_custom_call.1']
    #allocation8 [shape = 'u8[65536]{0}', space=vmem, size = 0x10000, scoped, tag = 'input window, operand 3, single buffered']
    #allocation9 [shape = 'u8[262144]{0}', space=vmem, size = 0x40000, scoped, tag = 'output window, operand 0, single buffered']
    %10 = vsyncpa [#allocation4], 0
    %11 = vsyncpa [#allocation7], 0
    %12 = vsyncpa [#allocation5], 0
    // Predicated region
    $region2: #{tpu_custom_call.1} parent=1 // pred_check
      _
    $region3: #{tpu_custom_call.1} parent=1 // pred_check_branch
      %14 = sbr.rel (0) target = $region5
    $region4: #{tpu_custom_call.1} parent=1 // pred_region
      %s16 = ssub.s32 8192, 8192
      %17 = vsyncadd [#allocation4], %s16
      %s18 = sshll.u32 [#allocation3], 4
      %s19 = int_to_ptr.vmem [resolvable:$true] %s18
      %24 = dma.hbm_to_vmem [thread:$0]  %s0, 8192, %s19, [#allocation4], 128, 128, 8
    $region5: #{tpu_custom_call.1} parent=1 // pred_fallthru
      _
    // Predicated region
    $region6: #{tpu_custom_call.1} parent=1 // pred_check
      _
    $region7: #{tpu_custom_call.1} parent=1 // pred_check_branch
      %26 = sbr.rel (0) target = $region9
    $region8: #{tpu_custom_call.1} parent=1 // pred_region
      %s28 = ssub.s32 2048, 2048
      %29 = vsyncadd [#allocation7], %s28
      %s30 = sshll.u32 [#allocation6], 4
      %s31 = int_to_ptr.vmem [resolvable:$true] %s30
      %36 = dma.hbm_to_vmem [thread:$0]  %s1, 2048, %s31, [#allocation7], 128, 128, 8
    $region9: #{tpu_custom_call.1} parent=1 // pred_fallthru
      _
    // Predicated region
    $region10: #{tpu_custom_call.1} parent=1 // pred_check
      _
    $region11: #{tpu_custom_call.1} parent=1 // pred_check_branch
      %38 = sbr.rel (0) target = $region13
    $region12: #{tpu_custom_call.1} parent=1 // pred_region
      _
    $region13: #{tpu_custom_call.1} parent=1 // pred_fallthru
      _
    // Predicated region
    $region14: #{tpu_custom_call.1} parent=1 // pred_check
      _
    $region15: #{tpu_custom_call.1} parent=1 // pred_check_branch
      %40 = sbr.rel (0) target = $region17
    $region16: #{tpu_custom_call.1} parent=1 // pred_region
      %s42 = ssub.s32 2048, 2048
      %43 = vsyncadd [#allocation7], %s42
      %s44 = sshll.u32 [#allocation8], 4
      %s45 = int_to_ptr.vmem [resolvable:$true] %s44
      %50 = dma.hbm_to_vmem [thread:$0]  %s3, 2048, %s45, [#allocation7], 64, 64, 4
    $region17: #{tpu_custom_call.1} parent=1 // pred_fallthru
      _
    // Predicated region
    $region18: #{tpu_custom_call.1} parent=1 // pred_check
      _
    $region19: #{tpu_custom_call.1} parent=1 // pred_check_branch
      %52 = sbr.rel (0) target = $region21
    $region20: #{tpu_custom_call.1} parent=1 // pred_region
      _
    $region21: #{tpu_custom_call.1} parent=1 // pred_fallthru
      _
    // Predicated region
    $region22: #{tpu_custom_call.1} parent=1 // pred_check
      _
    $region23: #{tpu_custom_call.1} parent=1 // pred_check_branch
      %54 = sbr.rel (0) target = $region25
    $region24: #{tpu_custom_call.1} parent=1 // pred_region
      %55 = dma.done [#allocation4], 8192
    $region25: #{tpu_custom_call.1} parent=1 // pred_fallthru
      _
    // Predicated region
    $region26: #{tpu_custom_call.1} parent=1 // pred_check
      _
    $region27: #{tpu_custom_call.1} parent=1 // pred_check_branch
      %57 = sbr.rel (0) target = $region29
    $region28: #{tpu_custom_call.1} parent=1 // pred_region
      %58 = dma.done [#allocation7], 2048
    $region29: #{tpu_custom_call.1} parent=1 // pred_fallthru
      _
    // Predicated region
    $region30: #{tpu_custom_call.1} parent=1 // pred_check
      _
    $region31: #{tpu_custom_call.1} parent=1 // pred_check_branch
      %60 = sbr.rel (0) target = $region33
    $region32: #{tpu_custom_call.1} parent=1 // pred_region
      %61 = dma.done [#allocation7], 2048
    $region33: #{tpu_custom_call.1} parent=1 // pred_fallthru
      _
    %p63 = scmp.eq.s32.totalorder 0, 0
    // Predicated region
    $region34: #{tpu_custom_call.1} parent=1 // pred_check
      %p64 = pneg %p63
    $region35: #{tpu_custom_call.1} parent=1 // pred_check_branch
      %66 = sbr.rel (%p64) target = $region37
    $region36: #{tpu_custom_call.1} parent=1 // pred_region
      %67 = vst [vmem:[#allocation2] sm:$0xff] 0.0
      %68 = vst [vmem:[#allocation2 + $0x8] sm:$0xff] 0.0
      %69 = vst [vmem:[#allocation2 + $0x10] sm:$0xff] 0.0
      %70 = vst [vmem:[#allocation2 + $0x18] sm:$0xff] 0.0
      %71 = vst [vmem:[#allocation2 + $0x20] sm:$0xff] 0.0
      %72 = vst [vmem:[#allocation2 + $0x28] sm:$0xff] 0.0
      %73 = vst [vmem:[#allocation2 + $0x30] sm:$0xff] 0.0
      %74 = vst [vmem:[#allocation2 + $0x38] sm:$0xff] 0.0
      %75 = vst [vmem:[#allocation2 + $0x40] sm:$0xff] 0.0
      %76 = vst [vmem:[#allocation2 + $0x48] sm:$0xff] 0.0
      %77 = vst [vmem:[#allocation2 + $0x50] sm:$0xff] 0.0
      %78 = vst [vmem:[#allocation2 + $0x58] sm:$0xff] 0.0
      %79 = vst [vmem:[#allocation2 + $0x60] sm:$0xff] 0.0
      %80 = vst [vmem:[#allocation2 + $0x68] sm:$0xff] 0.0
      %81 = vst [vmem:[#allocation2 + $0x70] sm:$0xff] 0.0
      %82 = vst [vmem:[#allocation2 + $0x78] sm:$0xff] 0.0
      %83 = vst [vmem:[#allocation2 + $0x80] sm:$0xff] 0.0
      %84 = vst [vmem:[#allocation2 + $0x88] sm:$0xff] 0.0
      %85 = vst [vmem:[#allocation2 + $0x90] sm:$0xff] 0.0
      %86 = vst [vmem:[#allocation2 + $0x98] sm:$0xff] 0.0
      %87 = vst [vmem:[#allocation2 + $0xa0] sm:$0xff] 0.0
      %88 = vst [vmem:[#allocation2 + $0xa8] sm:$0xff] 0.0
      %89 = vst [vmem:[#allocation2 + $0xb0] sm:$0xff] 0.0
      %90 = vst [vmem:[#allocation2 + $0xb8] sm:$0xff] 0.0
      %91 = vst [vmem:[#allocation2 + $0xc0] sm:$0xff] 0.0
      %92 = vst [vmem:[#allocation2 + $0xc8] sm:$0xff] 0.0
      %93 = vst [vmem:[#allocation2 + $0xd0] sm:$0xff] 0.0
      %94 = vst [vmem:[#allocation2 + $0xd8] sm:$0xff] 0.0
      %95 = vst [vmem:[#allocation2 + $0xe0] sm:$0xff] 0.0
      %96 = vst [vmem:[#allocation2 + $0xe8] sm:$0xff] 0.0
      %97 = vst [vmem:[#allocation2 + $0xf0] sm:$0xff] 0.0
      %98 = vst [vmem:[#allocation2 + $0xf8] sm:$0xff] 0.0
      %99 = vst [vmem:[#allocation2 + $0x100] sm:$0xff] 0.0
      %100 = vst [vmem:[#allocation2 + $0x108] sm:$0xff] 0.0
      %101 = vst [vmem:[#allocation2 + $0x110] sm:$0xff] 0.0
      %102 = vst [vmem:[#allocation2 + $0x118] sm:$0xff] 0.0
      %103 = vst [vmem:[#allocation2 + $0x120] sm:$0xff] 0.0
      %104 = vst [vmem:[#allocation2 + $0x128] sm:$0xff] 0.0
      %105 = vst [vmem:[#allocation2 + $0x130] sm:$0xff] 0.0
      %106 = vst [vmem:[#allocation2 + $0x138] sm:$0xff] 0.0
      %107 = vst [vmem:[#allocation2 + $0x140] sm:$0xff] 0.0
      %108 = vst [vmem:[#allocation2 + $0x148] sm:$0xff] 0.0
      %109 = vst [vmem:[#allocation2 + $0x150] sm:$0xff] 0.0
      %110 = vst [vmem:[#allocation2 + $0x158] sm:$0xff] 0.0
      %111 = vst [vmem:[#allocation2 + $0x160] sm:$0xff] 0.0
      %112 = vst [vmem:[#allocation2 + $0x168] sm:$0xff] 0.0
      %113 = vst [vmem:[#allocation2 + $0x170] sm:$0xff] 0.0
      %114 = vst [vmem:[#allocation2 + $0x178] sm:$0xff] 0.0
      %115 = vst [vmem:[#allocation2 + $0x180] sm:$0xff] 0.0
      %116 = vst [vmem:[#allocation2 + $0x188] sm:$0xff] 0.0
      %117 = vst [vmem:[#allocation2 + $0x190] sm:$0xff] 0.0
      %118 = vst [vmem:[#allocation2 + $0x198] sm:$0xff] 0.0
      %119 = vst [vmem:[#allocation2 + $0x1a0] sm:$0xff] 0.0
      %120 = vst [vmem:[#allocation2 + $0x1a8] sm:$0xff] 0.0
      %121 = vst [vmem:[#allocation2 + $0x1b0] sm:$0xff] 0.0
      %122 = vst [vmem:[#allocation2 + $0x1b8] sm:$0xff] 0.0
      %123 = vst [vmem:[#allocation2 + $0x1c0] sm:$0xff] 0.0
      %124 = vst [vmem:[#allocation2 + $0x1c8] sm:$0xff] 0.0
      %125 = vst [vmem:[#allocation2 + $0x1d0] sm:$0xff] 0.0
      %126 = vst [vmem:[#allocation2 + $0x1d8] sm:$0xff] 0.0
      %127 = vst [vmem:[#allocation2 + $0x1e0] sm:$0xff] 0.0
      %128 = vst [vmem:[#allocation2 + $0x1e8] sm:$0xff] 0.0
      %129 = vst [vmem:[#allocation2 + $0x1f0] sm:$0xff] 0.0
      %130 = vst [vmem:[#allocation2 + $0x1f8] sm:$0xff] 0.0
    $region37: #{tpu_custom_call.1} parent=1 // pred_fallthru
      _
    %v131 = vld [vmem:[#allocation3] sm:$0xff]
    %v132 = vld [vmem:[#allocation3 + $0x8] sm:$0xff]
    %v133 = vld [vmem:[#allocation3 + $0x10] sm:$0xff]
    %v134 = vld [vmem:[#allocation3 + $0x18] sm:$0xff]
    %v135 = vld [vmem:[#allocation3 + $0x20] sm:$0xff]
    %v136 = vld [vmem:[#allocation3 + $0x28] sm:$0xff]
    %v137 = vld [vmem:[#allocation3 + $0x30] sm:$0xff]
    %v138 = vld [vmem:[#allocation3 + $0x38] sm:$0xff]
    %v139 = vld [vmem:[#allocation3 + $0x40] sm:$0xff]
    %v140 = vld [vmem:[#allocation3 + $0x48] sm:$0xff]
    %v141 = vld [vmem:[#allocation3 + $0x50] sm:$0xff]
    %v142 = vld [vmem:[#allocation3 + $0x58] sm:$0xff]
    %v143 = vld [vmem:[#allocation3 + $0x60] sm:$0xff]
    %v144 = vld [vmem:[#allocation3 + $0x68] sm:$0xff]
    %v145 = vld [vmem:[#allocation3 + $0x70] sm:$0xff]
    %v146 = vld [vmem:[#allocation3 + $0x78] sm:$0xff]
    %v147 = vld [vmem:[#allocation3 + $0x80] sm:$0xff]
    %v148 = vld [vmem:[#allocation3 + $0x88] sm:$0xff]
    %v149 = vld [vmem:[#allocation3 + $0x90] sm:$0xff]
    %v150 = vld [vmem:[#allocation3 + $0x98] sm:$0xff]
    %v151 = vld [vmem:[#allocation3 + $0xa0] sm:$0xff]
    %v152 = vld [vmem:[#allocation3 + $0xa8] sm:$0xff]
    %v153 = vld [vmem:[#allocation3 + $0xb0] sm:$0xff]
    %v154 = vld [vmem:[#allocation3 + $0xb8] sm:$0xff]
    %v155 = vld [vmem:[#allocation3 + $0xc0] sm:$0xff]
    %v156 = vld [vmem:[#allocation3 + $0xc8] sm:$0xff]
    %v157 = vld [vmem:[#allocation3 + $0xd0] sm:$0xff]
    %v158 = vld [vmem:[#allocation3 + $0xd8] sm:$0xff]
    %v159 = vld [vmem:[#allocation3 + $0xe0] sm:$0xff]
    %v160 = vld [vmem:[#allocation3 + $0xe8] sm:$0xff]
    %v161 = vld [vmem:[#allocation3 + $0xf0] sm:$0xff]
    %v162 = vld [vmem:[#allocation3 + $0xf8] sm:$0xff]
    %v163 = vld [vmem:[#allocation3 + $0x100] sm:$0xff]
    %v164 = vld [vmem:[#allocation3 + $0x108] sm:$0xff]
    %v165 = vld [vmem:[#allocation3 + $0x110] sm:$0xff]
    %v166 = vld [vmem:[#allocation3 + $0x118] sm:$0xff]
    %v167 = vld [vmem:[#allocation3 + $0x120] sm:$0xff]
    %v168 = vld [vmem:[#allocation3 + $0x128] sm:$0xff]
    %v169 = vld [vmem:[#allocation3 + $0x130] sm:$0xff]
    %v170 = vld [vmem:[#allocation3 + $0x138] sm:$0xff]
    %v171 = vld [vmem:[#allocation3 + $0x140] sm:$0xff]
    %v172 = vld [vmem:[#allocation3 + $0x148] sm:$0xff]
    %v173 = vld [vmem:[#allocation3 + $0x150] sm:$0xff]
    %v174 = vld [vmem:[#allocation3 + $0x158] sm:$0xff]
    %v175 = vld [vmem:[#allocation3 + $0x160] sm:$0xff]
    %v176 = vld [vmem:[#allocation3 + $0x168] sm:$0xff]
    %v177 = vld [vmem:[#allocation3 + $0x170] sm:$0xff]
    %v178 = vld [vmem:[#allocation3 + $0x178] sm:$0xff]
    %v179 = vld [vmem:[#allocation3 + $0x180] sm:$0xff]
    %v180 = vld [vmem:[#allocation3 + $0x188] sm:$0xff]
    %v181 = vld [vmem:[#allocation3 + $0x190] sm:$0xff]
    %v182 = vld [vmem:[#allocation3 + $0x198] sm:$0xff]
    %v183 = vld [vmem:[#allocation3 + $0x1a0] sm:$0xff]
    %v184 = vld [vmem:[#allocation3 + $0x1a8] sm:$0xff]
    %v185 = vld [vmem:[#allocation3 + $0x1b0] sm:$0xff]
    %v186 = vld [vmem:[#allocation3 + $0x1b8] sm:$0xff]
    %v187 = vld [vmem:[#allocation3 + $0x1c0] sm:$0xff]
    %v188 = vld [vmem:[#allocation3 + $0x1c8] sm:$0xff]
    %v189 = vld [vmem:[#allocation3 + $0x1d0] sm:$0xff]
    %v190 = vld [vmem:[#allocation3 + $0x1d8] sm:$0xff]
    %v191 = vld [vmem:[#allocation3 + $0x1e0] sm:$0xff]
    %v192 = vld [vmem:[#allocation3 + $0x1e8] sm:$0xff]
    %v193 = vld [vmem:[#allocation3 + $0x1f0] sm:$0xff]
    %v194 = vld [vmem:[#allocation3 + $0x1f8] sm:$0xff]
    %v195 = vpack.c.bf16 %v132, %v131
    %v196 = vpack.c.bf16 %v134, %v133
    %v197 = vpack.c.bf16 %v136, %v135
    %v198 = vpack.c.bf16 %v138, %v137
    %v199 = vpack.c.bf16 %v140, %v139
    %v200 = vpack.c.bf16 %v142, %v141
    %v201 = vpack.c.bf16 %v144, %v143
    %v202 = vpack.c.bf16 %v146, %v145
    %v203 = vpack.c.bf16 %v148, %v147
    %v204 = vpack.c.bf16 %v150, %v149
    %v205 = vpack.c.bf16 %v152, %v151
    %v206 = vpack.c.bf16 %v154, %v153
    %v207 = vpack.c.bf16 %v156, %v155
    %v208 = vpack.c.bf16 %v158, %v157
    %v209 = vpack.c.bf16 %v160, %v159
    %v210 = vpack.c.bf16 %v162, %v161
    %v211 = vpack.c.bf16 %v164, %v163
    %v212 = vpack.c.bf16 %v166, %v165
    %v213 = vpack.c.bf16 %v168, %v167
    %v214 = vpack.c.bf16 %v170, %v169
    %v215 = vpack.c.bf16 %v172, %v171
    %v216 = vpack.c.bf16 %v174, %v173
    %v217 = vpack.c.bf16 %v176, %v175
    %v218 = vpack.c.bf16 %v178, %v177
    %v219 = vpack.c.bf16 %v180, %v179
    %v220 = vpack.c.bf16 %v182, %v181
    %v221 = vpack.c.bf16 %v184, %v183
    %v222 = vpack.c.bf16 %v186, %v185
    %v223 = vpack.c.bf16 %v188, %v187
    %v224 = vpack.c.bf16 %v190, %v189
    %v225 = vpack.c.bf16 %v192, %v191
    %v226 = vpack.c.bf16 %v194, %v193
    %v227 = vld [vmem:[#allocation6] sm:$0xff]
    %v228 = vld [vmem:[#allocation6 + $0x8] sm:$0xff]
    %v229 = vld [vmem:[#allocation6 + $0x10] sm:$0xff]
    %v230 = vld [vmem:[#allocation6 + $0x18] sm:$0xff]
    %v231 = vld [vmem:[#allocation6 + $0x20] sm:$0xff]
    %v232 = vld [vmem:[#allocation6 + $0x28] sm:$0xff]
    %v233 = vld [vmem:[#allocation6 + $0x30] sm:$0xff]
    %v234 = vld [vmem:[#allocation6 + $0x38] sm:$0xff]
    %v235 = vld [vmem:[#allocation6 + $0x40] sm:$0xff]
    %v236 = vld [vmem:[#allocation6 + $0x48] sm:$0xff]
    %v237 = vld [vmem:[#allocation6 + $0x50] sm:$0xff]
    %v238 = vld [vmem:[#allocation6 + $0x58] sm:$0xff]
    %v239 = vld [vmem:[#allocation6 + $0x60] sm:$0xff]
    %v240 = vld [vmem:[#allocation6 + $0x68] sm:$0xff]
    %v241 = vld [vmem:[#allocation6 + $0x70] sm:$0xff]
    %v242 = vld [vmem:[#allocation6 + $0x78] sm:$0xff]
    %v243 = vld [vmem:[%s2] sm:$0x3]
    %v245 = vlaneseq
    %v246 = vshrl.u32 %v245, 7
    %v247 = vsub.s32 0, %v246
    %v248 = vrot.slane %v243, %v247
    %v249 = vlaneseq
    %v250 = vshrl.u32 %v249, 7
    %v251 = vsub.s32 1, %v250
    %v252 = vrot.slane %v243, %v251
    %v271 = vunpack.c.l.b16 %v227
    %v272 = vunpack.c.h.b16 %v227
    %v273 = vunpack.c.l.b16 %v228
    %v274 = vunpack.c.h.b16 %v228
    %v275 = vunpack.c.l.b16 %v229
    %v276 = vunpack.c.h.b16 %v229
    %v277 = vunpack.c.l.b16 %v230
    %v278 = vunpack.c.h.b16 %v230
    %v279 = vunpack.c.l.b16 %v231
    %v280 = vunpack.c.h.b16 %v231
    %v281 = vunpack.c.l.b16 %v232
    %v282 = vunpack.c.h.b16 %v232
    %v283 = vunpack.c.l.b16 %v233
    %v284 = vunpack.c.h.b16 %v233
    %v285 = vunpack.c.l.b16 %v234
    %v286 = vunpack.c.h.b16 %v234
    %v287 = vunpack.c.l.b16 %v235
    %v288 = vunpack.c.h.b16 %v235
    %v289 = vunpack.c.l.b16 %v236
    %v290 = vunpack.c.h.b16 %v236
    %v291 = vunpack.c.l.b16 %v237
    %v292 = vunpack.c.h.b16 %v237
    %v293 = vunpack.c.l.b16 %v238
    %v294 = vunpack.c.h.b16 %v238
    %v295 = vunpack.c.l.b16 %v239
    %v296 = vunpack.c.h.b16 %v239
    %v297 = vunpack.c.l.b16 %v240
    %v298 = vunpack.c.h.b16 %v240
    %v299 = vunpack.c.l.b16 %v241
    %v300 = vunpack.c.h.b16 %v241
    %v301 = vunpack.c.l.b16 %v242
    %v302 = vunpack.c.h.b16 %v242
    %v303 = vpack.c.b16 %v273, %v271
    %v304 = vpack.c.b16 %v274, %v272
    %v305 = vpack.c.b16 %v277, %v275
    %v306 = vpack.c.b16 %v278, %v276
    %v307 = vpack.c.b16 %v281, %v279
    %v308 = vpack.c.b16 %v282, %v280
    %v309 = vpack.c.b16 %v285, %v283
    %v310 = vpack.c.b16 %v286, %v284
    %v311 = vpack.c.b16 %v289, %v287
    %v312 = vpack.c.b16 %v290, %v288
    %v313 = vpack.c.b16 %v293, %v291
    %v314 = vpack.c.b16 %v294, %v292
    %v315 = vpack.c.b16 %v297, %v295
    %v316 = vpack.c.b16 %v298, %v296
    %v317 = vpack.c.b16 %v301, %v299
    %v318 = vpack.c.b16 %v302, %v300
    %335 = vmatprep.subr.bf16.mxu0 %v318
    %336 = vmatpush1.bf16.msra.mxu0 %v317
    %337 = vmatprep.subr.bf16.mxu0 %v316
    %338 = vmatpush1.bf16.msra.mxu0 %v315
    %339 = vmatprep.subr.bf16.mxu0 %v314
    %340 = vmatpush1.bf16.msra.mxu0 %v313
    %341 = vmatprep.subr.bf16.mxu0 %v312
    %342 = vmatpush1.bf16.msra.mxu0 %v311
    %343 = vmatprep.subr.bf16.mxu0 %v310
    %344 = vmatpush1.bf16.msra.mxu0 %v309
    %345 = vmatprep.subr.bf16.mxu0 %v308
    %346 = vmatpush1.bf16.msra.mxu0 %v307
    %347 = vmatprep.subr.bf16.mxu0 %v306
    %348 = vmatpush1.bf16.msra.mxu0 %v305
    %349 = vmatprep.subr.bf16.mxu0 %v304
    %350 = vmatpush1.bf16.msra.mxu0 %v303
    %351 = vmatprep.subr.bf16.mxu0 0
    %352 = vmatpush2.bf16.msra.mxu0 0
    %353 = vmatprep.subr.bf16.mxu0 0
    %354 = vmatpush2.bf16.msra.mxu0 0
    %355 = vmatprep.subr.bf16.mxu0 0
    %356 = vmatpush2.bf16.msra.mxu0 0
    %357 = vmatprep.subr.bf16.mxu0 0
    %358 = vmatpush2.bf16.msra.mxu0 0
    %359 = vmatprep.subr.bf16.mxu0 0
    %360 = vmatpush2.bf16.msra.mxu0 0
    %361 = vmatprep.subr.bf16.mxu0 0
    %362 = vmatpush2.bf16.msra.mxu0 0
    %363 = vmatprep.subr.bf16.mxu0 0
    %364 = vmatpush2.bf16.msra.mxu0 0
    %365 = vmatprep.subr.bf16.mxu0 0
    %366 = vmatpush2.bf16.msra.mxu0 0
    %367 = vmatprep.mubr.bf16.mxu0 0
    %368 = vmatmul.mubr.bf16.gmra.mxu0 %v195
    %v369 = vpop.f32.mrf.mxu0
    %v370 = vadd.f32 %v248, %v369
    %v371 = vpop.f32.mrf.mxu0
    %v372 = vadd.f32 %v252, %v371
    %v373 = vpop.f32.mrf.mxu0
    %v374 = vadd.f32 %v248, %v373
    %v375 = vpop.f32.mrf.mxu0
    %v376 = vadd.f32 %v252, %v375
    %377 = vmatprep.mubr.bf16.mxu0 0
    %378 = vmatmul.mubr.bf16.gmra.mxu0 %v196
    %v379 = vpop.f32.mrf.mxu0
    %v380 = vadd.f32 %v248, %v379
    %v381 = vpop.f32.mrf.mxu0
    %v382 = vadd.f32 %v252, %v381
    %v383 = vpop.f32.mrf.mxu0
    %v384 = vadd.f32 %v248, %v383
    %v385 = vpop.f32.mrf.mxu0
    %v386 = vadd.f32 %v252, %v385
    %387 = vmatprep.mubr.bf16.mxu0 0
    %388 = vmatmul.mubr.bf16.gmra.mxu0 %v197
    %v389 = vpop.f32.mrf.mxu0
    %v390 = vadd.f32 %v248, %v389
    %v391 = vpop.f32.mrf.mxu0
    %v392 = vadd.f32 %v252, %v391
    %v393 = vpop.f32.mrf.mxu0
    %v394 = vadd.f32 %v248, %v393
    %v395 = vpop.f32.mrf.mxu0
    %v396 = vadd.f32 %v252, %v395
    %397 = vmatprep.mubr.bf16.mxu0 0
    %398 = vmatmul.mubr.bf16.gmra.mxu0 %v198
    %v399 = vpop.f32.mrf.mxu0
    %v400 = vadd.f32 %v248, %v399
    %v401 = vpop.f32.mrf.mxu0
    %v402 = vadd.f32 %v252, %v401
    %v403 = vpop.f32.mrf.mxu0
    %v404 = vadd.f32 %v248, %v403
    %v405 = vpop.f32.mrf.mxu0
    %v406 = vadd.f32 %v252, %v405
    %407 = vmatprep.mubr.bf16.mxu0 0
    %408 = vmatmul.mubr.bf16.gmra.mxu0 %v199
    %v409 = vpop.f32.mrf.mxu0
    %v410 = vadd.f32 %v248, %v409
    %v411 = vpop.f32.mrf.mxu0
    %v412 = vadd.f32 %v252, %v411
    %v413 = vpop.f32.mrf.mxu0
    %v414 = vadd.f32 %v248, %v413
    %v415 = vpop.f32.mrf.mxu0
    %v416 = vadd.f32 %v252, %v415
    %417 = vmatprep.mubr.bf16.mxu0 0
    %418 = vmatmul.mubr.bf16.gmra.mxu0 %v200
    %v419 = vpop.f32.mrf.mxu0
    %v420 = vadd.f32 %v248, %v419
    %v421 = vpop.f32.mrf.mxu0
    %v422 = vadd.f32 %v252, %v421
    %v423 = vpop.f32.mrf.mxu0
    %v424 = vadd.f32 %v248, %v423
    %v425 = vpop.f32.mrf.mxu0
    %v426 = vadd.f32 %v252, %v425
    %427 = vmatprep.mubr.bf16.mxu0 0
    %428 = vmatmul.mubr.bf16.gmra.mxu0 %v201
    %v429 = vpop.f32.mrf.mxu0
    %v430 = vadd.f32 %v248, %v429
    %v431 = vpop.f32.mrf.mxu0
    %v432 = vadd.f32 %v252, %v431
    %v433 = vpop.f32.mrf.mxu0
    %v434 = vadd.f32 %v248, %v433
    %v435 = vpop.f32.mrf.mxu0
    %v436 = vadd.f32 %v252, %v435
    %437 = vmatprep.mubr.bf16.mxu0 0
    %438 = vmatmul.mubr.bf16.gmra.mxu0 %v202
    %v439 = vpop.f32.mrf.mxu0
    %v440 = vadd.f32 %v248, %v439
    %v441 = vpop.f32.mrf.mxu0
    %v442 = vadd.f32 %v252, %v441
    %v443 = vpop.f32.mrf.mxu0
    %v444 = vadd.f32 %v248, %v443
    %v445 = vpop.f32.mrf.mxu0
    %v446 = vadd.f32 %v252, %v445
    %447 = vmatprep.mubr.bf16.mxu0 0
    %448 = vmatmul.mubr.bf16.gmra.mxu0 %v203
    %v449 = vpop.f32.mrf.mxu0
    %v450 = vadd.f32 %v248, %v449
    %v451 = vpop.f32.mrf.mxu0
    %v452 = vadd.f32 %v252, %v451
    %v453 = vpop.f32.mrf.mxu0
    %v454 = vadd.f32 %v248, %v453
    %v455 = vpop.f32.mrf.mxu0
    %v456 = vadd.f32 %v252, %v455
    %457 = vmatprep.mubr.bf16.mxu0 0
    %458 = vmatmul.mubr.bf16.gmra.mxu0 %v204
    %v459 = vpop.f32.mrf.mxu0
    %v460 = vadd.f32 %v248, %v459
    %v461 = vpop.f32.mrf.mxu0
    %v462 = vadd.f32 %v252, %v461
    %v463 = vpop.f32.mrf.mxu0
    %v464 = vadd.f32 %v248, %v463
    %v465 = vpop.f32.mrf.mxu0
    %v466 = vadd.f32 %v252, %v465
    %467 = vmatprep.mubr.bf16.mxu0 0
    %468 = vmatmul.mubr.bf16.gmra.mxu0 %v205
    %v469 = vpop.f32.mrf.mxu0
    %v470 = vadd.f32 %v248, %v469
    %v471 = vpop.f32.mrf.mxu0
    %v472 = vadd.f32 %v252, %v471
    %v473 = vpop.f32.mrf.mxu0
    %v474 = vadd.f32 %v248, %v473
    %v475 = vpop.f32.mrf.mxu0
    %v476 = vadd.f32 %v252, %v475
    %477 = vmatprep.mubr.bf16.mxu0 0
    %478 = vmatmul.mubr.bf16.gmra.mxu0 %v206
    %v479 = vpop.f32.mrf.mxu0
    %v480 = vadd.f32 %v248, %v479
    %v481 = vpop.f32.mrf.mxu0
    %v482 = vadd.f32 %v252, %v481
    %v483 = vpop.f32.mrf.mxu0
    %v484 = vadd.f32 %v248, %v483
    %v485 = vpop.f32.mrf.mxu0
    %v486 = vadd.f32 %v252, %v485
    %487 = vmatprep.mubr.bf16.mxu0 0
    %488 = vmatmul.mubr.bf16.gmra.mxu0 %v207
    %v489 = vpop.f32.mrf.mxu0
    %v490 = vadd.f32 %v248, %v489
    %v491 = vpop.f32.mrf.mxu0
    %v492 = vadd.f32 %v252, %v491
    %v493 = vpop.f32.mrf.mxu0
    %v494 = vadd.f32 %v248, %v493
    %v495 = vpop.f32.mrf.mxu0
    %v496 = vadd.f32 %v252, %v495
    %497 = vmatprep.mubr.bf16.mxu0 0
    %498 = vmatmul.mubr.bf16.gmra.mxu0 %v208
    %v499 = vpop.f32.mrf.mxu0
    %v500 = vadd.f32 %v248, %v499
    %v501 = vpop.f32.mrf.mxu0
    %v502 = vadd.f32 %v252, %v501
    %v503 = vpop.f32.mrf.mxu0
    %v504 = vadd.f32 %v248, %v503
    %v505 = vpop.f32.mrf.mxu0
    %v506 = vadd.f32 %v252, %v505
    %507 = vmatprep.mubr.bf16.mxu0 0
    %508 = vmatmul.mubr.bf16.gmra.mxu0 %v209
    %v509 = vpop.f32.mrf.mxu0
    %v510 = vadd.f32 %v248, %v509
    %v511 = vpop.f32.mrf.mxu0
    %v512 = vadd.f32 %v252, %v511
    %v513 = vpop.f32.mrf.mxu0
    %v514 = vadd.f32 %v248, %v513
    %v515 = vpop.f32.mrf.mxu0
    %v516 = vadd.f32 %v252, %v515
    %517 = vmatprep.mubr.bf16.mxu0 0
    %518 = vmatmul.mubr.bf16.gmra.mxu0 %v210
    %v519 = vpop.f32.mrf.mxu0
    %v520 = vadd.f32 %v248, %v519
    %v521 = vpop.f32.mrf.mxu0
    %v522 = vadd.f32 %v252, %v521
    %v523 = vpop.f32.mrf.mxu0
    %v524 = vadd.f32 %v248, %v523
    %v525 = vpop.f32.mrf.mxu0
    %v526 = vadd.f32 %v252, %v525
    %527 = vmatprep.mubr.bf16.mxu0 0
    %528 = vmatmul.mubr.bf16.gmra.mxu0 %v211
    %v529 = vpop.f32.mrf.mxu0
    %v530 = vadd.f32 %v248, %v529
    %v531 = vpop.f32.mrf.mxu0
    %v532 = vadd.f32 %v252, %v531
    %v533 = vpop.f32.mrf.mxu0
    %v534 = vadd.f32 %v248, %v533
    %v535 = vpop.f32.mrf.mxu0
    %v536 = vadd.f32 %v252, %v535
    %537 = vmatprep.mubr.bf16.mxu0 0
    %538 = vmatmul.mubr.bf16.gmra.mxu0 %v212
    %v539 = vpop.f32.mrf.mxu0
    %v540 = vadd.f32 %v248, %v539
    %v541 = vpop.f32.mrf.mxu0
    %v542 = vadd.f32 %v252, %v541
    %v543 = vpop.f32.mrf.mxu0
    %v544 = vadd.f32 %v248, %v543
    %v545 = vpop.f32.mrf.mxu0
    %v546 = vadd.f32 %v252, %v545
    %547 = vmatprep.mubr.bf16.mxu0 0
    %548 = vmatmul.mubr.bf16.gmra.mxu0 %v213
    %v549 = vpop.f32.mrf.mxu0
    %v550 = vadd.f32 %v248, %v549
    %v551 = vpop.f32.mrf.mxu0
    %v552 = vadd.f32 %v252, %v551
    %v553 = vpop.f32.mrf.mxu0
    %v554 = vadd.f32 %v248, %v553
    %v555 = vpop.f32.mrf.mxu0
    %v556 = vadd.f32 %v252, %v555
    %557 = vmatprep.mubr.bf16.mxu0 0
    %558 = vmatmul.mubr.bf16.gmra.mxu0 %v214
    %v559 = vpop.f32.mrf.mxu0
    %v560 = vadd.f32 %v248, %v559
    %v561 = vpop.f32.mrf.mxu0
    %v562 = vadd.f32 %v252, %v561
    %v563 = vpop.f32.mrf.mxu0
    %v564 = vadd.f32 %v248, %v563
    %v565 = vpop.f32.mrf.mxu0
    %v566 = vadd.f32 %v252, %v565
    %567 = vmatprep.mubr.bf16.mxu0 0
    %568 = vmatmul.mubr.bf16.gmra.mxu0 %v215
    %v569 = vpop.f32.mrf.mxu0
    %v570 = vadd.f32 %v248, %v569
    %v571 = vpop.f32.mrf.mxu0
    %v572 = vadd.f32 %v252, %v571
    %v573 = vpop.f32.mrf.mxu0
    %v574 = vadd.f32 %v248, %v573
    %v575 = vpop.f32.mrf.mxu0
    %v576 = vadd.f32 %v252, %v575
    %577 = vmatprep.mubr.bf16.mxu0 0
    %578 = vmatmul.mubr.bf16.gmra.mxu0 %v216
    %v579 = vpop.f32.mrf.mxu0
    %v580 = vadd.f32 %v248, %v579
    %v581 = vpop.f32.mrf.mxu0
    %v582 = vadd.f32 %v252, %v581
    %v583 = vpop.f32.mrf.mxu0
    %v584 = vadd.f32 %v248, %v583
    %v585 = vpop.f32.mrf.mxu0
    %v586 = vadd.f32 %v252, %v585
    %587 = vmatprep.mubr.bf16.mxu0 0
    %588 = vmatmul.mubr.bf16.gmra.mxu0 %v217
    %v589 = vpop.f32.mrf.mxu0
    %v590 = vadd.f32 %v248, %v589
    %v591 = vpop.f32.mrf.mxu0
    %v592 = vadd.f32 %v252, %v591
    %v593 = vpop.f32.mrf.mxu0
    %v594 = vadd.f32 %v248, %v593
    %v595 = vpop.f32.mrf.mxu0
    %v596 = vadd.f32 %v252, %v595
    %597 = vmatprep.mubr.bf16.mxu0 0
    %598 = vmatmul.mubr.bf16.gmra.mxu0 %v218
    %v599 = vpop.f32.mrf.mxu0
    %v600 = vadd.f32 %v248, %v599
    %v601 = vpop.f32.mrf.mxu0
    %v602 = vadd.f32 %v252, %v601
    %v603 = vpop.f32.mrf.mxu0
    %v604 = vadd.f32 %v248, %v603
    %v605 = vpop.f32.mrf.mxu0
    %v606 = vadd.f32 %v252, %v605
    %607 = vmatprep.mubr.bf16.mxu0 0
    %608 = vmatmul.mubr.bf16.gmra.mxu0 %v219
    %v609 = vpop.f32.mrf.mxu0
    %v610 = vadd.f32 %v248, %v609
    %v611 = vpop.f32.mrf.mxu0
    %v612 = vadd.f32 %v252, %v611
    %v613 = vpop.f32.mrf.mxu0
    %v614 = vadd.f32 %v248, %v613
    %v615 = vpop.f32.mrf.mxu0
    %v616 = vadd.f32 %v252, %v615
    %617 = vmatprep.mubr.bf16.mxu0 0
    %618 = vmatmul.mubr.bf16.gmra.mxu0 %v220
    %v619 = vpop.f32.mrf.mxu0
    %v620 = vadd.f32 %v248, %v619
    %v621 = vpop.f32.mrf.mxu0
    %v622 = vadd.f32 %v252, %v621
    %v623 = vpop.f32.mrf.mxu0
    %v624 = vadd.f32 %v248, %v623
    %v625 = vpop.f32.mrf.mxu0
    %v626 = vadd.f32 %v252, %v625
    %627 = vmatprep.mubr.bf16.mxu0 0
    %628 = vmatmul.mubr.bf16.gmra.mxu0 %v221
    %v629 = vpop.f32.mrf.mxu0
    %v630 = vadd.f32 %v248, %v629
    %v631 = vpop.f32.mrf.mxu0
    %v632 = vadd.f32 %v252, %v631
    %v633 = vpop.f32.mrf.mxu0
    %v634 = vadd.f32 %v248, %v633
    %v635 = vpop.f32.mrf.mxu0
    %v636 = vadd.f32 %v252, %v635
    %637 = vmatprep.mubr.bf16.mxu0 0
    %638 = vmatmul.mubr.bf16.gmra.mxu0 %v222
    %v639 = vpop.f32.mrf.mxu0
    %v640 = vadd.f32 %v248, %v639
    %v641 = vpop.f32.mrf.mxu0
    %v642 = vadd.f32 %v252, %v641
    %v643 = vpop.f32.mrf.mxu0
    %v644 = vadd.f32 %v248, %v643
    %v645 = vpop.f32.mrf.mxu0
    %v646 = vadd.f32 %v252, %v645
    %647 = vmatprep.mubr.bf16.mxu0 0
    %648 = vmatmul.mubr.bf16.gmra.mxu0 %v223
    %v649 = vpop.f32.mrf.mxu0
    %v650 = vadd.f32 %v248, %v649
    %v651 = vpop.f32.mrf.mxu0
    %v652 = vadd.f32 %v252, %v651
    %v653 = vpop.f32.mrf.mxu0
    %v654 = vadd.f32 %v248, %v653
    %v655 = vpop.f32.mrf.mxu0
    %v656 = vadd.f32 %v252, %v655
    %657 = vmatprep.mubr.bf16.mxu0 0
    %658 = vmatmul.mubr.bf16.gmra.mxu0 %v224
    %v659 = vpop.f32.mrf.mxu0
    %v660 = vadd.f32 %v248, %v659
    %v661 = vpop.f32.mrf.mxu0
    %v662 = vadd.f32 %v252, %v661
    %v663 = vpop.f32.mrf.mxu0
    %v664 = vadd.f32 %v248, %v663
    %v665 = vpop.f32.mrf.mxu0
    %v666 = vadd.f32 %v252, %v665
    %667 = vmatprep.mubr.bf16.mxu0 0
    %668 = vmatmul.mubr.bf16.gmra.mxu0 %v225
    %v669 = vpop.f32.mrf.mxu0
    %v670 = vadd.f32 %v248, %v669
    %v671 = vpop.f32.mrf.mxu0
    %v672 = vadd.f32 %v252, %v671
    %v673 = vpop.f32.mrf.mxu0
    %v674 = vadd.f32 %v248, %v673
    %v675 = vpop.f32.mrf.mxu0
    %v676 = vadd.f32 %v252, %v675
    %677 = vmatprep.mubr.bf16.mxu0 0
    %678 = vmatmul.mubr.bf16.gmra.mxu0 %v226
    %v679 = vpop.f32.mrf.mxu0
    %v680 = vadd.f32 %v248, %v679
    %v681 = vpop.f32.mrf.mxu0
    %v682 = vadd.f32 %v252, %v681
    %v683 = vpop.f32.mrf.mxu0
    %v684 = vadd.f32 %v248, %v683
    %v685 = vpop.f32.mrf.mxu0
    %v686 = vadd.f32 %v252, %v685
    %687 = vdwg.mxu0
    %v688 = vmul.f32 %v370, 0.5
    %v689 = vmul.f32 %v372, 0.5
    %v690 = vmul.f32 %v374, 0.5
    %v691 = vmul.f32 %v376, 0.5
    %v692 = vmul.f32 %v380, 0.5
    %v693 = vmul.f32 %v382, 0.5
    %v694 = vmul.f32 %v384, 0.5
    %v695 = vmul.f32 %v386, 0.5
    %v696 = vmul.f32 %v390, 0.5
    %v697 = vmul.f32 %v392, 0.5
    %v698 = vmul.f32 %v394, 0.5
    %v699 = vmul.f32 %v396, 0.5
    %v700 = vmul.f32 %v400, 0.5
    %v701 = vmul.f32 %v402, 0.5
    %v702 = vmul.f32 %v404, 0.5
    %v703 = vmul.f32 %v406, 0.5
    %v704 = vmul.f32 %v410, 0.5
    %v705 = vmul.f32 %v412, 0.5
    %v706 = vmul.f32 %v414, 0.5
    %v707 = vmul.f32 %v416, 0.5
    %v708 = vmul.f32 %v420, 0.5
    %v709 = vmul.f32 %v422, 0.5
    %v710 = vmul.f32 %v424, 0.5
    %v711 = vmul.f32 %v426, 0.5
    %v712 = vmul.f32 %v430, 0.5
    %v713 = vmul.f32 %v432, 0.5
    %v714 = vmul.f32 %v434, 0.5
    %v715 = vmul.f32 %v436, 0.5
    %v716 = vmul.f32 %v440, 0.5
    %v717 = vmul.f32 %v442, 0.5
    %v718 = vmul.f32 %v444, 0.5
    %v719 = vmul.f32 %v446, 0.5
    %v720 = vmul.f32 %v450, 0.5
    %v721 = vmul.f32 %v452, 0.5
    %v722 = vmul.f32 %v454, 0.5
    %v723 = vmul.f32 %v456, 0.5
    %v724 = vmul.f32 %v460, 0.5
    %v725 = vmul.f32 %v462, 0.5
    %v726 = vmul.f32 %v464, 0.5
    %v727 = vmul.f32 %v466, 0.5
    %v728 = vmul.f32 %v470, 0.5
    %v729 = vmul.f32 %v472, 0.5
    %v730 = vmul.f32 %v474, 0.5
    %v731 = vmul.f32 %v476, 0.5
    %v732 = vmul.f32 %v480, 0.5
    %v733 = vmul.f32 %v482, 0.5
    %v734 = vmul.f32 %v484, 0.5
    %v735 = vmul.f32 %v486, 0.5
    %v736 = vmul.f32 %v490, 0.5
    %v737 = vmul.f32 %v492, 0.5
    %v738 = vmul.f32 %v494, 0.5
    %v739 = vmul.f32 %v496, 0.5
    %v740 = vmul.f32 %v500, 0.5
    %v741 = vmul.f32 %v502, 0.5
    %v742 = vmul.f32 %v504, 0.5
    %v743 = vmul.f32 %v506, 0.5
    %v744 = vmul.f32 %v510, 0.5
    %v745 = vmul.f32 %v512, 0.5
    %v746 = vmul.f32 %v514, 0.5
    %v747 = vmul.f32 %v516, 0.5
    %v748 = vmul.f32 %v520, 0.5
    %v749 = vmul.f32 %v522, 0.5
    %v750 = vmul.f32 %v524, 0.5
    %v751 = vmul.f32 %v526, 0.5
    %v752 = vmul.f32 %v530, 0.5
    %v753 = vmul.f32 %v532, 0.5
    %v754 = vmul.f32 %v534, 0.5
    %v755 = vmul.f32 %v536, 0.5
    %v756 = vmul.f32 %v540, 0.5
    %v757 = vmul.f32 %v542, 0.5
    %v758 = vmul.f32 %v544, 0.5
    %v759 = vmul.f32 %v546, 0.5
    %v760 = vmul.f32 %v550, 0.5
    %v761 = vmul.f32 %v552, 0.5
    %v762 = vmul.f32 %v554, 0.5
    %v763 = vmul.f32 %v556, 0.5
    %v764 = vmul.f32 %v560, 0.5
    %v765 = vmul.f32 %v562, 0.5
    %v766 = vmul.f32 %v564, 0.5
    %v767 = vmul.f32 %v566, 0.5
    %v768 = vmul.f32 %v570, 0.5
    %v769 = vmul.f32 %v572, 0.5
    %v770 = vmul.f32 %v574, 0.5
    %v771 = vmul.f32 %v576, 0.5
    %v772 = vmul.f32 %v580, 0.5
    %v773 = vmul.f32 %v582, 0.5
    %v774 = vmul.f32 %v584, 0.5
    %v775 = vmul.f32 %v586, 0.5
    %v776 = vmul.f32 %v590, 0.5
    %v777 = vmul.f32 %v592, 0.5
    %v778 = vmul.f32 %v594, 0.5
    %v779 = vmul.f32 %v596, 0.5
    %v780 = vmul.f32 %v600, 0.5
    %v781 = vmul.f32 %v602, 0.5
    %v782 = vmul.f32 %v604, 0.5
    %v783 = vmul.f32 %v606, 0.5
    %v784 = vmul.f32 %v610, 0.5
    %v785 = vmul.f32 %v612, 0.5
    %v786 = vmul.f32 %v614, 0.5
    %v787 = vmul.f32 %v616, 0.5
    %v788 = vmul.f32 %v620, 0.5
    %v789 = vmul.f32 %v622, 0.5
    %v790 = vmul.f32 %v624, 0.5
    %v791 = vmul.f32 %v626, 0.5
    %v792 = vmul.f32 %v630, 0.5
    %v793 = vmul.f32 %v632, 0.5
    %v794 = vmul.f32 %v634, 0.5
    %v795 = vmul.f32 %v636, 0.5
    %v796 = vmul.f32 %v640, 0.5
    %v797 = vmul.f32 %v642, 0.5
    %v798 = vmul.f32 %v644, 0.5
    %v799 = vmul.f32 %v646, 0.5
    %v800 = vmul.f32 %v650, 0.5
    %v801 = vmul.f32 %v652, 0.5
    %v802 = vmul.f32 %v654, 0.5
    %v803 = vmul.f32 %v656, 0.5
    %v804 = vmul.f32 %v660, 0.5
    %v805 = vmul.f32 %v662, 0.5
    %v806 = vmul.f32 %v664, 0.5
    %v807 = vmul.f32 %v666, 0.5
    %v808 = vmul.f32 %v670, 0.5
    %v809 = vmul.f32 %v672, 0.5
    %v810 = vmul.f32 %v674, 0.5
    %v811 = vmul.f32 %v676, 0.5
    %v812 = vmul.f32 %v680, 0.5
    %v813 = vmul.f32 %v682, 0.5
    %v814 = vmul.f32 %v684, 0.5
    %v815 = vmul.f32 %v686, 0.5
    %v816 = vmul.f32 %v370, %v370
    %v817 = vmul.f32 %v372, %v372
    %v818 = vmul.f32 %v374, %v374
    %v819 = vmul.f32 %v376, %v376
    %v820 = vmul.f32 %v380, %v380
    %v821 = vmul.f32 %v382, %v382
    %v822 = vmul.f32 %v384, %v384
    %v823 = vmul.f32 %v386, %v386
    %v824 = vmul.f32 %v390, %v390
    %v825 = vmul.f32 %v392, %v392
    %v826 = vmul.f32 %v394, %v394
    %v827 = vmul.f32 %v396, %v396
    %v828 = vmul.f32 %v400, %v400
    %v829 = vmul.f32 %v402, %v402
    %v830 = vmul.f32 %v404, %v404
    %v831 = vmul.f32 %v406, %v406
    %v832 = vmul.f32 %v410, %v410
    %v833 = vmul.f32 %v412, %v412
    %v834 = vmul.f32 %v414, %v414
    %v835 = vmul.f32 %v416, %v416
    %v836 = vmul.f32 %v420, %v420
    %v837 = vmul.f32 %v422, %v422
    %v838 = vmul.f32 %v424, %v424
    %v839 = vmul.f32 %v426, %v426
    %v840 = vmul.f32 %v430, %v430
    %v841 = vmul.f32 %v432, %v432
    %v842 = vmul.f32 %v434, %v434
    %v843 = vmul.f32 %v436, %v436
    %v844 = vmul.f32 %v440, %v440
    %v845 = vmul.f32 %v442, %v442
    %v846 = vmul.f32 %v444, %v444
    %v847 = vmul.f32 %v446, %v446
    %v848 = vmul.f32 %v450, %v450
    %v849 = vmul.f32 %v452, %v452
    %v850 = vmul.f32 %v454, %v454
    %v851 = vmul.f32 %v456, %v456
    %v852 = vmul.f32 %v460, %v460
    %v853 = vmul.f32 %v462, %v462
    %v854 = vmul.f32 %v464, %v464
    %v855 = vmul.f32 %v466, %v466
    %v856 = vmul.f32 %v470, %v470
    %v857 = vmul.f32 %v472, %v472
    %v858 = vmul.f32 %v474, %v474
    %v859 = vmul.f32 %v476, %v476
    %v860 = vmul.f32 %v480, %v480
    %v861 = vmul.f32 %v482, %v482
    %v862 = vmul.f32 %v484, %v484
    %v863 = vmul.f32 %v486, %v486
    %v864 = vmul.f32 %v490, %v490
    %v865 = vmul.f32 %v492, %v492
    %v866 = vmul.f32 %v494, %v494
    %v867 = vmul.f32 %v496, %v496
    %v868 = vmul.f32 %v500, %v500
    %v869 = vmul.f32 %v502, %v502
    %v870 = vmul.f32 %v504, %v504
    %v871 = vmul.f32 %v506, %v506
    %v872 = vmul.f32 %v510, %v510
    %v873 = vmul.f32 %v512, %v512
    %v874 = vmul.f32 %v514, %v514
    %v875 = vmul.f32 %v516, %v516
    %v876 = vmul.f32 %v520, %v520
    %v877 = vmul.f32 %v522, %v522
    %v878 = vmul.f32 %v524, %v524
    %v879 = vmul.f32 %v526, %v526
    %v880 = vmul.f32 %v530, %v530
    %v881 = vmul.f32 %v532, %v532
    %v882 = vmul.f32 %v534, %v534
    %v883 = vmul.f32 %v536, %v536
    %v884 = vmul.f32 %v540, %v540
    %v885 = vmul.f32 %v542, %v542
    %v886 = vmul.f32 %v544, %v544
    %v887 = vmul.f32 %v546, %v546
    %v888 = vmul.f32 %v550, %v550
    %v889 = vmul.f32 %v552, %v552
    %v890 = vmul.f32 %v554, %v554
    %v891 = vmul.f32 %v556, %v556
    %v892 = vmul.f32 %v560, %v560
    %v893 = vmul.f32 %v562, %v562
    %v894 = vmul.f32 %v564, %v564
    %v895 = vmul.f32 %v566, %v566
    %v896 = vmul.f32 %v570, %v570
    %v897 = vmul.f32 %v572, %v572
    %v898 = vmul.f32 %v574, %v574
    %v899 = vmul.f32 %v576, %v576
    %v900 = vmul.f32 %v580, %v580
    %v901 = vmul.f32 %v582, %v582
    %v902 = vmul.f32 %v584, %v584
    %v903 = vmul.f32 %v586, %v586
    %v904 = vmul.f32 %v590, %v590
    %v905 = vmul.f32 %v592, %v592
    %v906 = vmul.f32 %v594, %v594
    %v907 = vmul.f32 %v596, %v596
    %v908 = vmul.f32 %v600, %v600
    %v909 = vmul.f32 %v602, %v602
    %v910 = vmul.f32 %v604, %v604
    %v911 = vmul.f32 %v606, %v606
    %v912 = vmul.f32 %v610, %v610
    %v913 = vmul.f32 %v612, %v612
    %v914 = vmul.f32 %v614, %v614
    %v915 = vmul.f32 %v616, %v616
    %v916 = vmul.f32 %v620, %v620
    %v917 = vmul.f32 %v622, %v622
    %v918 = vmul.f32 %v624, %v624
    %v919 = vmul.f32 %v626, %v626
    %v920 = vmul.f32 %v630, %v630
    %v921 = vmul.f32 %v632, %v632
    %v922 = vmul.f32 %v634, %v634
    %v923 = vmul.f32 %v636, %v636
    %v924 = vmul.f32 %v640, %v640
    %v925 = vmul.f32 %v642, %v642
    %v926 = vmul.f32 %v644, %v644
    %v927 = vmul.f32 %v646, %v646
    %v928 = vmul.f32 %v650, %v650
    %v929 = vmul.f32 %v652, %v652
    %v930 = vmul.f32 %v654, %v654
    %v931 = vmul.f32 %v656, %v656
    %v932 = vmul.f32 %v660, %v660
    %v933 = vmul.f32 %v662, %v662
    %v934 = vmul.f32 %v664, %v664
    %v935 = vmul.f32 %v666, %v666
    %v936 = vmul.f32 %v670, %v670
    %v937 = vmul.f32 %v672, %v672
    %v938 = vmul.f32 %v674, %v674
    %v939 = vmul.f32 %v676, %v676
    %v940 = vmul.f32 %v680, %v680
    %v941 = vmul.f32 %v682, %v682
    %v942 = vmul.f32 %v684, %v684
    %v943 = vmul.f32 %v686, %v686
    %v944 = vmul.f32 %v816, %v370
    %v945 = vmul.f32 %v817, %v372
    %v946 = vmul.f32 %v818, %v374
    %v947 = vmul.f32 %v819, %v376
    %v948 = vmul.f32 %v820, %v380
    %v949 = vmul.f32 %v821, %v382
    %v950 = vmul.f32 %v822, %v384
    %v951 = vmul.f32 %v823, %v386
    %v952 = vmul.f32 %v824, %v390
    %v953 = vmul.f32 %v825, %v392
    %v954 = vmul.f32 %v826, %v394
    %v955 = vmul.f32 %v827, %v396
    %v956 = vmul.f32 %v828, %v400
    %v957 = vmul.f32 %v829, %v402
    %v958 = vmul.f32 %v830, %v404
    %v959 = vmul.f32 %v831, %v406
    %v960 = vmul.f32 %v832, %v410
    %v961 = vmul.f32 %v833, %v412
    %v962 = vmul.f32 %v834, %v414
    %v963 = vmul.f32 %v835, %v416
    %v964 = vmul.f32 %v836, %v420
    %v965 = vmul.f32 %v837, %v422
    %v966 = vmul.f32 %v838, %v424
    %v967 = vmul.f32 %v839, %v426
    %v968 = vmul.f32 %v840, %v430
    %v969 = vmul.f32 %v841, %v432
    %v970 = vmul.f32 %v842, %v434
    %v971 = vmul.f32 %v843, %v436
    %v972 = vmul.f32 %v844, %v440
    %v973 = vmul.f32 %v845, %v442
    %v974 = vmul.f32 %v846, %v444
    %v975 = vmul.f32 %v847, %v446
    %v976 = vmul.f32 %v848, %v450
    %v977 = vmul.f32 %v849, %v452
    %v978 = vmul.f32 %v850, %v454
    %v979 = vmul.f32 %v851, %v456
    %v980 = vmul.f32 %v852, %v460
    %v981 = vmul.f32 %v853, %v462
    %v982 = vmul.f32 %v854, %v464
    %v983 = vmul.f32 %v855, %v466
    %v984 = vmul.f32 %v856, %v470
    %v985 = vmul.f32 %v857, %v472
    %v986 = vmul.f32 %v858, %v474
    %v987 = vmul.f32 %v859, %v476
    %v988 = vmul.f32 %v860, %v480
    %v989 = vmul.f32 %v861, %v482
    %v990 = vmul.f32 %v862, %v484
    %v991 = vmul.f32 %v863, %v486
    %v992 = vmul.f32 %v864, %v490
    %v993 = vmul.f32 %v865, %v492
    %v994 = vmul.f32 %v866, %v494
    %v995 = vmul.f32 %v867, %v496
    %v996 = vmul.f32 %v868, %v500
    %v997 = vmul.f32 %v869, %v502
    %v998 = vmul.f32 %v870, %v504
    %v999 = vmul.f32 %v871, %v506
    %v1000 = vmul.f32 %v872, %v510
    %v1001 = vmul.f32 %v873, %v512
    %v1002 = vmul.f32 %v874, %v514
    %v1003 = vmul.f32 %v875, %v516
    %v1004 = vmul.f32 %v876, %v520
    %v1005 = vmul.f32 %v877, %v522
    %v1006 = vmul.f32 %v878, %v524
    %v1007 = vmul.f32 %v879, %v526
    %v1008 = vmul.f32 %v880, %v530
    %v1009 = vmul.f32 %v881, %v532
    %v1010 = vmul.f32 %v882, %v534
    %v1011 = vmul.f32 %v883, %v536
    %v1012 = vmul.f32 %v884, %v540
    %v1013 = vmul.f32 %v885, %v542
    %v1014 = vmul.f32 %v886, %v544
    %v1015 = vmul.f32 %v887, %v546
    %v1016 = vmul.f32 %v888, %v550
    %v1017 = vmul.f32 %v889, %v552
    %v1018 = vmul.f32 %v890, %v554
    %v1019 = vmul.f32 %v891, %v556
    %v1020 = vmul.f32 %v892, %v560
    %v1021 = vmul.f32 %v893, %v562
    %v1022 = vmul.f32 %v894, %v564
    %v1023 = vmul.f32 %v895, %v566
    %v1024 = vmul.f32 %v896, %v570
    %v1025 = vmul.f32 %v897, %v572
    %v1026 = vmul.f32 %v898, %v574
    %v1027 = vmul.f32 %v899, %v576
    %v1028 = vmul.f32 %v900, %v580
    %v1029 = vmul.f32 %v901, %v582
    %v1030 = vmul.f32 %v902, %v584
    %v1031 = vmul.f32 %v903, %v586
    %v1032 = vmul.f32 %v904, %v590
    %v1033 = vmul.f32 %v905, %v592
    %v1034 = vmul.f32 %v906, %v594
    %v1035 = vmul.f32 %v907, %v596
    %v1036 = vmul.f32 %v908, %v600
    %v1037 = vmul.f32 %v909, %v602
    %v1038 = vmul.f32 %v910, %v604
    %v1039 = vmul.f32 %v911, %v606
    %v1040 = vmul.f32 %v912, %v610
    %v1041 = vmul.f32 %v913, %v612
    %v1042 = vmul.f32 %v914, %v614
    %v1043 = vmul.f32 %v915, %v616
    %v1044 = vmul.f32 %v916, %v620
    %v1045 = vmul.f32 %v917, %v622
    %v1046 = vmul.f32 %v918, %v624
    %v1047 = vmul.f32 %v919, %v626
    %v1048 = vmul.f32 %v920, %v630
    %v1049 = vmul.f32 %v921, %v632
    %v1050 = vmul.f32 %v922, %v634
    %v1051 = vmul.f32 %v923, %v636
    %v1052 = vmul.f32 %v924, %v640
    %v1053 = vmul.f32 %v925, %v642
    %v1054 = vmul.f32 %v926, %v644
    %v1055 = vmul.f32 %v927, %v646
    %v1056 = vmul.f32 %v928, %v650
    %v1057 = vmul.f32 %v929, %v652
    %v1058 = vmul.f32 %v930, %v654
    %v1059 = vmul.f32 %v931, %v656
    %v1060 = vmul.f32 %v932, %v660
    %v1061 = vmul.f32 %v933, %v662
    %v1062 = vmul.f32 %v934, %v664
    %v1063 = vmul.f32 %v935, %v666
    %v1064 = vmul.f32 %v936, %v670
    %v1065 = vmul.f32 %v937, %v672
    %v1066 = vmul.f32 %v938, %v674
    %v1067 = vmul.f32 %v939, %v676
    %v1068 = vmul.f32 %v940, %v680
    %v1069 = vmul.f32 %v941, %v682
    %v1070 = vmul.f32 %v942, %v684
    %v1071 = vmul.f32 %v943, %v686
    %v1072 = vmul.f32 %v944, 0.044715
    %v1073 = vmul.f32 %v945, 0.044715
    %v1074 = vmul.f32 %v946, 0.044715
    %v1075 = vmul.f32 %v947, 0.044715
    %v1076 = vmul.f32 %v948, 0.044715
    %v1077 = vmul.f32 %v949, 0.044715
    %v1078 = vmul.f32 %v950, 0.044715
    %v1079 = vmul.f32 %v951, 0.044715
    %v1080 = vmul.f32 %v952, 0.044715
    %v1081 = vmul.f32 %v953, 0.044715
    %v1082 = vmul.f32 %v954, 0.044715
    %v1083 = vmul.f32 %v955, 0.044715
    %v1084 = vmul.f32 %v956, 0.044715
    %v1085 = vmul.f32 %v957, 0.044715
    %v1086 = vmul.f32 %v958, 0.044715
    %v1087 = vmul.f32 %v959, 0.044715
    %v1088 = vmul.f32 %v960, 0.044715
    %v1089 = vmul.f32 %v961, 0.044715
    %v1090 = vmul.f32 %v962, 0.044715
    %v1091 = vmul.f32 %v963, 0.044715
    %v1092 = vmul.f32 %v964, 0.044715
    %v1093 = vmul.f32 %v965, 0.044715
    %v1094 = vmul.f32 %v966, 0.044715
    %v1095 = vmul.f32 %v967, 0.044715
    %v1096 = vmul.f32 %v968, 0.044715
    %v1097 = vmul.f32 %v969, 0.044715
    %v1098 = vmul.f32 %v970, 0.044715
    %v1099 = vmul.f32 %v971, 0.044715
    %v1100 = vmul.f32 %v972, 0.044715
    %v1101 = vmul.f32 %v973, 0.044715
    %v1102 = vmul.f32 %v974, 0.044715
    %v1103 = vmul.f32 %v975, 0.044715
    %v1104 = vmul.f32 %v976, 0.044715
    %v1105 = vmul.f32 %v977, 0.044715
    %v1106 = vmul.f32 %v978, 0.044715
    %v1107 = vmul.f32 %v979, 0.044715
    %v1108 = vmul.f32 %v980, 0.044715
    %v1109 = vmul.f32 %v981, 0.044715
    %v1110 = vmul.f32 %v982, 0.044715
    %v1111 = vmul.f32 %v983, 0.044715
    %v1112 = vmul.f32 %v984, 0.044715
    %v1113 = vmul.f32 %v985, 0.044715
    %v1114 = vmul.f32 %v986, 0.044715
    %v1115 = vmul.f32 %v987, 0.044715
    %v1116 = vmul.f32 %v988, 0.044715
    %v1117 = vmul.f32 %v989, 0.044715
    %v1118 = vmul.f32 %v990, 0.044715
    %v1119 = vmul.f32 %v991, 0.044715
    %v1120 = vmul.f32 %v992, 0.044715
    %v1121 = vmul.f32 %v993, 0.044715
    %v1122 = vmul.f32 %v994, 0.044715
    %v1123 = vmul.f32 %v995, 0.044715
    %v1124 = vmul.f32 %v996, 0.044715
    %v1125 = vmul.f32 %v997, 0.044715
    %v1126 = vmul.f32 %v998, 0.044715
    %v1127 = vmul.f32 %v999, 0.044715
    %v1128 = vmul.f32 %v1000, 0.044715
    %v1129 = vmul.f32 %v1001, 0.044715
    %v1130 = vmul.f32 %v1002, 0.044715
    %v1131 = vmul.f32 %v1003, 0.044715
    %v1132 = vmul.f32 %v1004, 0.044715
    %v1133 = vmul.f32 %v1005, 0.044715
    %v1134 = vmul.f32 %v1006, 0.044715
    %v1135 = vmul.f32 %v1007, 0.044715
    %v1136 = vmul.f32 %v1008, 0.044715
    %v1137 = vmul.f32 %v1009, 0.044715
    %v1138 = vmul.f32 %v1010, 0.044715
    %v1139 = vmul.f32 %v1011, 0.044715
    %v1140 = vmul.f32 %v1012, 0.044715
    %v1141 = vmul.f32 %v1013, 0.044715
    %v1142 = vmul.f32 %v1014, 0.044715
    %v1143 = vmul.f32 %v1015, 0.044715
    %v1144 = vmul.f32 %v1016, 0.044715
    %v1145 = vmul.f32 %v1017, 0.044715
    %v1146 = vmul.f32 %v1018, 0.044715
    %v1147 = vmul.f32 %v1019, 0.044715
    %v1148 = vmul.f32 %v1020, 0.044715
    %v1149 = vmul.f32 %v1021, 0.044715
    %v1150 = vmul.f32 %v1022, 0.044715
    %v1151 = vmul.f32 %v1023, 0.044715
    %v1152 = vmul.f32 %v1024, 0.044715
    %v1153 = vmul.f32 %v1025, 0.044715
    %v1154 = vmul.f32 %v1026, 0.044715
    %v1155 = vmul.f32 %v1027, 0.044715
    %v1156 = vmul.f32 %v1028, 0.044715
    %v1157 = vmul.f32 %v1029, 0.044715
    %v1158 = vmul.f32 %v1030, 0.044715
    %v1159 = vmul.f32 %v1031, 0.044715
    %v1160 = vmul.f32 %v1032, 0.044715
    %v1161 = vmul.f32 %v1033, 0.044715
    %v1162 = vmul.f32 %v1034, 0.044715
    %v1163 = vmul.f32 %v1035, 0.044715
    %v1164 = vmul.f32 %v1036, 0.044715
    %v1165 = vmul.f32 %v1037, 0.044715
    %v1166 = vmul.f32 %v1038, 0.044715
    %v1167 = vmul.f32 %v1039, 0.044715
    %v1168 = vmul.f32 %v1040, 0.044715
    %v1169 = vmul.f32 %v1041, 0.044715
    %v1170 = vmul.f32 %v1042, 0.044715
    %v1171 = vmul.f32 %v1043, 0.044715
    %v1172 = vmul.f32 %v1044, 0.044715
    %v1173 = vmul.f32 %v1045, 0.044715
    %v1174 = vmul.f32 %v1046, 0.044715
    %v1175 = vmul.f32 %v1047, 0.044715
    %v1176 = vmul.f32 %v1048, 0.044715
    %v1177 = vmul.f32 %v1049, 0.044715
    %v1178 = vmul.f32 %v1050, 0.044715
    %v1179 = vmul.f32 %v1051, 0.044715
    %v1180 = vmul.f32 %v1052, 0.044715
    %v1181 = vmul.f32 %v1053, 0.044715
    %v1182 = vmul.f32 %v1054, 0.044715
    %v1183 = vmul.f32 %v1055, 0.044715
    %v1184 = vmul.f32 %v1056, 0.044715
    %v1185 = vmul.f32 %v1057, 0.044715
    %v1186 = vmul.f32 %v1058, 0.044715
    %v1187 = vmul.f32 %v1059, 0.044715
    %v1188 = vmul.f32 %v1060, 0.044715
    %v1189 = vmul.f32 %v1061, 0.044715
    %v1190 = vmul.f32 %v1062, 0.044715
    %v1191 = vmul.f32 %v1063, 0.044715
    %v1192 = vmul.f32 %v1064, 0.044715
    %v1193 = vmul.f32 %v1065, 0.044715
    %v1194 = vmul.f32 %v1066, 0.044715
    %v1195 = vmul.f32 %v1067, 0.044715
    %v1196 = vmul.f32 %v1068, 0.044715
    %v1197 = vmul.f32 %v1069, 0.044715
    %v1198 = vmul.f32 %v1070, 0.044715
    %v1199 = vmul.f32 %v1071, 0.044715
    %v1200 = vadd.f32 %v370, %v1072
    %v1201 = vadd.f32 %v372, %v1073
    %v1202 = vadd.f32 %v374, %v1074
    %v1203 = vadd.f32 %v376, %v1075
    %v1204 = vadd.f32 %v380, %v1076
    %v1205 = vadd.f32 %v382, %v1077
    %v1206 = vadd.f32 %v384, %v1078
    %v1207 = vadd.f32 %v386, %v1079
    %v1208 = vadd.f32 %v390, %v1080
    %v1209 = vadd.f32 %v392, %v1081
    %v1210 = vadd.f32 %v394, %v1082
    %v1211 = vadd.f32 %v396, %v1083
    %v1212 = vadd.f32 %v400, %v1084
    %v1213 = vadd.f32 %v402, %v1085
    %v1214 = vadd.f32 %v404, %v1086
    %v1215 = vadd.f32 %v406, %v1087
    %v1216 = vadd.f32 %v410, %v1088
    %v1217 = vadd.f32 %v412, %v1089
    %v1218 = vadd.f32 %v414, %v1090
    %v1219 = vadd.f32 %v416, %v1091
    %v1220 = vadd.f32 %v420, %v1092
    %v1221 = vadd.f32 %v422, %v1093
    %v1222 = vadd.f32 %v424, %v1094
    %v1223 = vadd.f32 %v426, %v1095
    %v1224 = vadd.f32 %v430, %v1096
    %v1225 = vadd.f32 %v432, %v1097
    %v1226 = vadd.f32 %v434, %v1098
    %v1227 = vadd.f32 %v436, %v1099
    %v1228 = vadd.f32 %v440, %v1100
    %v1229 = vadd.f32 %v442, %v1101
    %v1230 = vadd.f32 %v444, %v1102
    %v1231 = vadd.f32 %v446, %v1103
    %v1232 = vadd.f32 %v450, %v1104
    %v1233 = vadd.f32 %v452, %v1105
    %v1234 = vadd.f32 %v454, %v1106
    %v1235 = vadd.f32 %v456, %v1107
    %v1236 = vadd.f32 %v460, %v1108
    %v1237 = vadd.f32 %v462, %v1109
    %v1238 = vadd.f32 %v464, %v1110
    %v1239 = vadd.f32 %v466, %v1111
    %v1240 = vadd.f32 %v470, %v1112
    %v1241 = vadd.f32 %v472, %v1113
    %v1242 = vadd.f32 %v474, %v1114
    %v1243 = vadd.f32 %v476, %v1115
    %v1244 = vadd.f32 %v480, %v1116
    %v1245 = vadd.f32 %v482, %v1117
    %v1246 = vadd.f32 %v484, %v1118
    %v1247 = vadd.f32 %v486, %v1119
    %v1248 = vadd.f32 %v490, %v1120
    %v1249 = vadd.f32 %v492, %v1121
    %v1250 = vadd.f32 %v494, %v1122
    %v1251 = vadd.f32 %v496, %v1123
    %v1252 = vadd.f32 %v500, %v1124
    %v1253 = vadd.f32 %v502, %v1125
    %v1254 = vadd.f32 %v504, %v1126
    %v1255 = vadd.f32 %v506, %v1127
    %v1256 = vadd.f32 %v510, %v1128
    %v1257 = vadd.f32 %v512, %v1129
    %v1258 = vadd.f32 %v514, %v1130
    %v1259 = vadd.f32 %v516, %v1131
    %v1260 = vadd.f32 %v520, %v1132
    %v1261 = vadd.f32 %v522, %v1133
    %v1262 = vadd.f32 %v524, %v1134
    %v1263 = vadd.f32 %v526, %v1135
    %v1264 = vadd.f32 %v530, %v1136
    %v1265 = vadd.f32 %v532, %v1137
    %v1266 = vadd.f32 %v534, %v1138
    %v1267 = vadd.f32 %v536, %v1139
    %v1268 = vadd.f32 %v540, %v1140
    %v1269 = vadd.f32 %v542, %v1141
    %v1270 = vadd.f32 %v544, %v1142
    %v1271 = vadd.f32 %v546, %v1143
    %v1272 = vadd.f32 %v550, %v1144
    %v1273 = vadd.f32 %v552, %v1145
    %v1274 = vadd.f32 %v554, %v1146
    %v1275 = vadd.f32 %v556, %v1147
    %v1276 = vadd.f32 %v560, %v1148
    %v1277 = vadd.f32 %v562, %v1149
    %v1278 = vadd.f32 %v564, %v1150
    %v1279 = vadd.f32 %v566, %v1151
    %v1280 = vadd.f32 %v570, %v1152
    %v1281 = vadd.f32 %v572, %v1153
    %v1282 = vadd.f32 %v574, %v1154
    %v1283 = vadd.f32 %v576, %v1155
    %v1284 = vadd.f32 %v580, %v1156
    %v1285 = vadd.f32 %v582, %v1157
    %v1286 = vadd.f32 %v584, %v1158
    %v1287 = vadd.f32 %v586, %v1159
    %v1288 = vadd.f32 %v590, %v1160
    %v1289 = vadd.f32 %v592, %v1161
    %v1290 = vadd.f32 %v594, %v1162
    %v1291 = vadd.f32 %v596, %v1163
    %v1292 = vadd.f32 %v600, %v1164
    %v1293 = vadd.f32 %v602, %v1165
    %v1294 = vadd.f32 %v604, %v1166
    %v1295 = vadd.f32 %v606, %v1167
    %v1296 = vadd.f32 %v610, %v1168
    %v1297 = vadd.f32 %v612, %v1169
    %v1298 = vadd.f32 %v614, %v1170
    %v1299 = vadd.f32 %v616, %v1171
    %v1300 = vadd.f32 %v620, %v1172
    %v1301 = vadd.f32 %v622, %v1173
    %v1302 = vadd.f32 %v624, %v1174
    %v1303 = vadd.f32 %v626, %v1175
    %v1304 = vadd.f32 %v630, %v1176
    %v1305 = vadd.f32 %v632, %v1177
    %v1306 = vadd.f32 %v634, %v1178
    %v1307 = vadd.f32 %v636, %v1179
    %v1308 = vadd.f32 %v640, %v1180
    %v1309 = vadd.f32 %v642, %v1181
    %v1310 = vadd.f32 %v644, %v1182
    %v1311 = vadd.f32 %v646, %v1183
    %v1312 = vadd.f32 %v650, %v1184
    %v1313 = vadd.f32 %v652, %v1185
    %v1314 = vadd.f32 %v654, %v1186
    %v1315 = vadd.f32 %v656, %v1187
    %v1316 = vadd.f32 %v660, %v1188
    %v1317 = vadd.f32 %v662, %v1189
    %v1318 = vadd.f32 %v664, %v1190
    %v1319 = vadd.f32 %v666, %v1191
    %v1320 = vadd.f32 %v670, %v1192
    %v1321 = vadd.f32 %v672, %v1193
    %v1322 = vadd.f32 %v674, %v1194
    %v1323 = vadd.f32 %v676, %v1195
    %v1324 = vadd.f32 %v680, %v1196
    %v1325 = vadd.f32 %v682, %v1197
    %v1326 = vadd.f32 %v684, %v1198
    %v1327 = vadd.f32 %v686, %v1199
    %v1328 = vmul.f32 %v1200, 0.7978846
    %v1329 = vmul.f32 %v1201, 0.7978846
    %v1330 = vmul.f32 %v1202, 0.7978846
    %v1331 = vmul.f32 %v1203, 0.7978846
    %v1332 = vmul.f32 %v1204, 0.7978846
    %v1333 = vmul.f32 %v1205, 0.7978846
    %v1334 = vmul.f32 %v1206, 0.7978846
    %v1335 = vmul.f32 %v1207, 0.7978846
    %v1336 = vmul.f32 %v1208, 0.7978846
    %v1337 = vmul.f32 %v1209, 0.7978846
    %v1338 = vmul.f32 %v1210, 0.7978846
    %v1339 = vmul.f32 %v1211, 0.7978846
    %v1340 = vmul.f32 %v1212, 0.7978846
    %v1341 = vmul.f32 %v1213, 0.7978846
    %v1342 = vmul.f32 %v1214, 0.7978846
    %v1343 = vmul.f32 %v1215, 0.7978846
    %v1344 = vmul.f32 %v1216, 0.7978846
    %v1345 = vmul.f32 %v1217, 0.7978846
    %v1346 = vmul.f32 %v1218, 0.7978846
    %v1347 = vmul.f32 %v1219, 0.7978846
    %v1348 = vmul.f32 %v1220, 0.7978846
    %v1349 = vmul.f32 %v1221, 0.7978846
    %v1350 = vmul.f32 %v1222, 0.7978846
    %v1351 = vmul.f32 %v1223, 0.7978846
    %v1352 = vmul.f32 %v1224, 0.7978846
    %v1353 = vmul.f32 %v1225, 0.7978846
    %v1354 = vmul.f32 %v1226, 0.7978846
    %v1355 = vmul.f32 %v1227, 0.7978846
    %v1356 = vmul.f32 %v1228, 0.7978846
    %v1357 = vmul.f32 %v1229, 0.7978846
    %v1358 = vmul.f32 %v1230, 0.7978846
    %v1359 = vmul.f32 %v1231, 0.7978846
    %v1360 = vmul.f32 %v1232, 0.7978846
    %v1361 = vmul.f32 %v1233, 0.7978846
    %v1362 = vmul.f32 %v1234, 0.7978846
    %v1363 = vmul.f32 %v1235, 0.7978846
    %v1364 = vmul.f32 %v1236, 0.7978846
    %v1365 = vmul.f32 %v1237, 0.7978846
    %v1366 = vmul.f32 %v1238, 0.7978846
    %v1367 = vmul.f32 %v1239, 0.7978846
    %v1368 = vmul.f32 %v1240, 0.7978846
    %v1369 = vmul.f32 %v1241, 0.7978846
    %v1370 = vmul.f32 %v1242, 0.7978846
    %v1371 = vmul.f32 %v1243, 0.7978846
    %v1372 = vmul.f32 %v1244, 0.7978846
    %v1373 = vmul.f32 %v1245, 0.7978846
    %v1374 = vmul.f32 %v1246, 0.7978846
    %v1375 = vmul.f32 %v1247, 0.7978846
    %v1376 = vmul.f32 %v1248, 0.7978846
    %v1377 = vmul.f32 %v1249, 0.7978846
    %v1378 = vmul.f32 %v1250, 0.7978846
    %v1379 = vmul.f32 %v1251, 0.7978846
    %v1380 = vmul.f32 %v1252, 0.7978846
    %v1381 = vmul.f32 %v1253, 0.7978846
    %v1382 = vmul.f32 %v1254, 0.7978846
    %v1383 = vmul.f32 %v1255, 0.7978846
    %v1384 = vmul.f32 %v1256, 0.7978846
    %v1385 = vmul.f32 %v1257, 0.7978846
    %v1386 = vmul.f32 %v1258, 0.7978846
    %v1387 = vmul.f32 %v1259, 0.7978846
    %v1388 = vmul.f32 %v1260, 0.7978846
    %v1389 = vmul.f32 %v1261, 0.7978846
    %v1390 = vmul.f32 %v1262, 0.7978846
    %v1391 = vmul.f32 %v1263, 0.7978846
    %v1392 = vmul.f32 %v1264, 0.7978846
    %v1393 = vmul.f32 %v1265, 0.7978846
    %v1394 = vmul.f32 %v1266, 0.7978846
    %v1395 = vmul.f32 %v1267, 0.7978846
    %v1396 = vmul.f32 %v1268, 0.7978846
    %v1397 = vmul.f32 %v1269, 0.7978846
    %v1398 = vmul.f32 %v1270, 0.7978846
    %v1399 = vmul.f32 %v1271, 0.7978846
    %v1400 = vmul.f32 %v1272, 0.7978846
    %v1401 = vmul.f32 %v1273, 0.7978846
    %v1402 = vmul.f32 %v1274, 0.7978846
    %v1403 = vmul.f32 %v1275, 0.7978846
    %v1404 = vmul.f32 %v1276, 0.7978846
    %v1405 = vmul.f32 %v1277, 0.7978846
    %v1406 = vmul.f32 %v1278, 0.7978846
    %v1407 = vmul.f32 %v1279, 0.7978846
    %v1408 = vmul.f32 %v1280, 0.7978846
    %v1409 = vmul.f32 %v1281, 0.7978846
    %v1410 = vmul.f32 %v1282, 0.7978846
    %v1411 = vmul.f32 %v1283, 0.7978846
    %v1412 = vmul.f32 %v1284, 0.7978846
    %v1413 = vmul.f32 %v1285, 0.7978846
    %v1414 = vmul.f32 %v1286, 0.7978846
    %v1415 = vmul.f32 %v1287, 0.7978846
    %v1416 = vmul.f32 %v1288, 0.7978846
    %v1417 = vmul.f32 %v1289, 0.7978846
    %v1418 = vmul.f32 %v1290, 0.7978846
    %v1419 = vmul.f32 %v1291, 0.7978846
    %v1420 = vmul.f32 %v1292, 0.7978846
    %v1421 = vmul.f32 %v1293, 0.7978846
    %v1422 = vmul.f32 %v1294, 0.7978846
    %v1423 = vmul.f32 %v1295, 0.7978846
    %v1424 = vmul.f32 %v1296, 0.7978846
    %v1425 = vmul.f32 %v1297, 0.7978846
    %v1426 = vmul.f32 %v1298, 0.7978846
    %v1427 = vmul.f32 %v1299, 0.7978846
    %v1428 = vmul.f32 %v1300, 0.7978846
    %v1429 = vmul.f32 %v1301, 0.7978846
    %v1430 = vmul.f32 %v1302, 0.7978846
    %v1431 = vmul.f32 %v1303, 0.7978846
    %v1432 = vmul.f32 %v1304, 0.7978846
    %v1433 = vmul.f32 %v1305, 0.7978846
    %v1434 = vmul.f32 %v1306, 0.7978846
    %v1435 = vmul.f32 %v1307, 0.7978846
    %v1436 = vmul.f32 %v1308, 0.7978846
    %v1437 = vmul.f32 %v1309, 0.7978846
    %v1438 = vmul.f32 %v1310, 0.7978846
    %v1439 = vmul.f32 %v1311, 0.7978846
    %v1440 = vmul.f32 %v1312, 0.7978846
    %v1441 = vmul.f32 %v1313, 0.7978846
    %v1442 = vmul.f32 %v1314, 0.7978846
    %v1443 = vmul.f32 %v1315, 0.7978846
    %v1444 = vmul.f32 %v1316, 0.7978846
    %v1445 = vmul.f32 %v1317, 0.7978846
    %v1446 = vmul.f32 %v1318, 0.7978846
    %v1447 = vmul.f32 %v1319, 0.7978846
    %v1448 = vmul.f32 %v1320, 0.7978846
    %v1449 = vmul.f32 %v1321, 0.7978846
    %v1450 = vmul.f32 %v1322, 0.7978846
    %v1451 = vmul.f32 %v1323, 0.7978846
    %v1452 = vmul.f32 %v1324, 0.7978846
    %v1453 = vmul.f32 %v1325, 0.7978846
    %v1454 = vmul.f32 %v1326, 0.7978846
    %v1455 = vmul.f32 %v1327, 0.7978846
    %v1456 = vtanh.pop %v1328
    %v1457 = vtanh.pop %v1329
    %v1458 = vtanh.pop %v1330
    %v1459 = vtanh.pop %v1331
    %v1460 = vtanh.pop %v1332
    %v1461 = vtanh.pop %v1333
    %v1462 = vtanh.pop %v1334
    %v1463 = vtanh.pop %v1335
    %v1464 = vtanh.pop %v1336
    %v1465 = vtanh.pop %v1337
    %v1466 = vtanh.pop %v1338
    %v1467 = vtanh.pop %v1339
    %v1468 = vtanh.pop %v1340
    %v1469 = vtanh.pop %v1341
    %v1470 = vtanh.pop %v1342
    %v1471 = vtanh.pop %v1343
    %v1472 = vtanh.pop %v1344
    %v1473 = vtanh.pop %v1345
    %v1474 = vtanh.pop %v1346
    %v1475 = vtanh.pop %v1347
    %v1476 = vtanh.pop %v1348
    %v1477 = vtanh.pop %v1349
    %v1478 = vtanh.pop %v1350
    %v1479 = vtanh.pop %v1351
    %v1480 = vtanh.pop %v1352
    %v1481 = vtanh.pop %v1353
    %v1482 = vtanh.pop %v1354
    %v1483 = vtanh.pop %v1355
    %v1484 = vtanh.pop %v1356
    %v1485 = vtanh.pop %v1357
    %v1486 = vtanh.pop %v1358
    %v1487 = vtanh.pop %v1359
    %v1488 = vtanh.pop %v1360
    %v1489 = vtanh.pop %v1361
    %v1490 = vtanh.pop %v1362
    %v1491 = vtanh.pop %v1363
    %v1492 = vtanh.pop %v1364
    %v1493 = vtanh.pop %v1365
    %v1494 = vtanh.pop %v1366
    %v1495 = vtanh.pop %v1367
    %v1496 = vtanh.pop %v1368
    %v1497 = vtanh.pop %v1369
    %v1498 = vtanh.pop %v1370
    %v1499 = vtanh.pop %v1371
    %v1500 = vtanh.pop %v1372
    %v1501 = vtanh.pop %v1373
    %v1502 = vtanh.pop %v1374
    %v1503 = vtanh.pop %v1375
    %v1504 = vtanh.pop %v1376
    %v1505 = vtanh.pop %v1377
    %v1506 = vtanh.pop %v1378
    %v1507 = vtanh.pop %v1379
    %v1508 = vtanh.pop %v1380
    %v1509 = vtanh.pop %v1381
    %v1510 = vtanh.pop %v1382
    %v1511 = vtanh.pop %v1383
    %v1512 = vtanh.pop %v1384
    %v1513 = vtanh.pop %v1385
    %v1514 = vtanh.pop %v1386
    %v1515 = vtanh.pop %v1387
    %v1516 = vtanh.pop %v1388
    %v1517 = vtanh.pop %v1389
    %v1518 = vtanh.pop %v1390
    %v1519 = vtanh.pop %v1391
    %v1520 = vtanh.pop %v1392
    %v1521 = vtanh.pop %v1393
    %v1522 = vtanh.pop %v1394
    %v1523 = vtanh.pop %v1395
    %v1524 = vtanh.pop %v1396
    %v1525 = vtanh.pop %v1397
    %v1526 = vtanh.pop %v1398
    %v1527 = vtanh.pop %v1399
    %v1528 = vtanh.pop %v1400
    %v1529 = vtanh.pop %v1401
    %v1530 = vtanh.pop %v1402
    %v1531 = vtanh.pop %v1403
    %v1532 = vtanh.pop %v1404
    %v1533 = vtanh.pop %v1405
    %v1534 = vtanh.pop %v1406
    %v1535 = vtanh.pop %v1407
    %v1536 = vtanh.pop %v1408
    %v1537 = vtanh.pop %v1409
    %v1538 = vtanh.pop %v1410
    %v1539 = vtanh.pop %v1411
    %v1540 = vtanh.pop %v1412
    %v1541 = vtanh.pop %v1413
    %v1542 = vtanh.pop %v1414
    %v1543 = vtanh.pop %v1415
    %v1544 = vtanh.pop %v1416
    %v1545 = vtanh.pop %v1417
    %v1546 = vtanh.pop %v1418
    %v1547 = vtanh.pop %v1419
    %v1548 = vtanh.pop %v1420
    %v1549 = vtanh.pop %v1421
    %v1550 = vtanh.pop %v1422
    %v1551 = vtanh.pop %v1423
    %v1552 = vtanh.pop %v1424
    %v1553 = vtanh.pop %v1425
    %v1554 = vtanh.pop %v1426
    %v1555 = vtanh.pop %v1427
    %v1556 = vtanh.pop %v1428
    %v1557 = vtanh.pop %v1429
    %v1558 = vtanh.pop %v1430
    %v1559 = vtanh.pop %v1431
    %v1560 = vtanh.pop %v1432
    %v1561 = vtanh.pop %v1433
    %v1562 = vtanh.pop %v1434
    %v1563 = vtanh.pop %v1435
    %v1564 = vtanh.pop %v1436
    %v1565 = vtanh.pop %v1437
    %v1566 = vtanh.pop %v1438
    %v1567 = vtanh.pop %v1439
    %v1568 = vtanh.pop %v1440
    %v1569 = vtanh.pop %v1441
    %v1570 = vtanh.pop %v1442
    %v1571 = vtanh.pop %v1443
    %v1572 = vtanh.pop %v1444
    %v1573 = vtanh.pop %v1445
    %v1574 = vtanh.pop %v1446
    %v1575 = vtanh.pop %v1447
    %v1576 = vtanh.pop %v1448
    %v1577 = vtanh.pop %v1449
    %v1578 = vtanh.pop %v1450
    %v1579 = vtanh.pop %v1451
    %v1580 = vtanh.pop %v1452
    %v1581 = vtanh.pop %v1453
    %v1582 = vtanh.pop %v1454
    %v1583 = vtanh.pop %v1455
    %v1584 = vadd.f32 %v1456, 1.0
    %v1585 = vadd.f32 %v1457, 1.0
    %v1586 = vadd.f32 %v1458, 1.0
    %v1587 = vadd.f32 %v1459, 1.0
    %v1588 = vadd.f32 %v1460, 1.0
    %v1589 = vadd.f32 %v1461, 1.0
    %v1590 = vadd.f32 %v1462, 1.0
    %v1591 = vadd.f32 %v1463, 1.0
    %v1592 = vadd.f32 %v1464, 1.0
    %v1593 = vadd.f32 %v1465, 1.0
    %v1594 = vadd.f32 %v1466, 1.0
    %v1595 = vadd.f32 %v1467, 1.0
    %v1596 = vadd.f32 %v1468, 1.0
    %v1597 = vadd.f32 %v1469, 1.0
    %v1598 = vadd.f32 %v1470, 1.0
    %v1599 = vadd.f32 %v1471, 1.0
    %v1600 = vadd.f32 %v1472, 1.0
    %v1601 = vadd.f32 %v1473, 1.0
    %v1602 = vadd.f32 %v1474, 1.0
    %v1603 = vadd.f32 %v1475, 1.0
    %v1604 = vadd.f32 %v1476, 1.0
    %v1605 = vadd.f32 %v1477, 1.0
    %v1606 = vadd.f32 %v1478, 1.0
    %v1607 = vadd.f32 %v1479, 1.0
    %v1608 = vadd.f32 %v1480, 1.0
    %v1609 = vadd.f32 %v1481, 1.0
    %v1610 = vadd.f32 %v1482, 1.0
    %v1611 = vadd.f32 %v1483, 1.0
    %v1612 = vadd.f32 %v1484, 1.0
    %v1613 = vadd.f32 %v1485, 1.0
    %v1614 = vadd.f32 %v1486, 1.0
    %v1615 = vadd.f32 %v1487, 1.0
    %v1616 = vadd.f32 %v1488, 1.0
    %v1617 = vadd.f32 %v1489, 1.0
    %v1618 = vadd.f32 %v1490, 1.0
    %v1619 = vadd.f32 %v1491, 1.0
    %v1620 = vadd.f32 %v1492, 1.0
    %v1621 = vadd.f32 %v1493, 1.0
    %v1622 = vadd.f32 %v1494, 1.0
    %v1623 = vadd.f32 %v1495, 1.0
    %v1624 = vadd.f32 %v1496, 1.0
    %v1625 = vadd.f32 %v1497, 1.0
    %v1626 = vadd.f32 %v1498, 1.0
    %v1627 = vadd.f32 %v1499, 1.0
    %v1628 = vadd.f32 %v1500, 1.0
    %v1629 = vadd.f32 %v1501, 1.0
    %v1630 = vadd.f32 %v1502, 1.0
    %v1631 = vadd.f32 %v1503, 1.0
    %v1632 = vadd.f32 %v1504, 1.0
    %v1633 = vadd.f32 %v1505, 1.0
    %v1634 = vadd.f32 %v1506, 1.0
    %v1635 = vadd.f32 %v1507, 1.0
    %v1636 = vadd.f32 %v1508, 1.0
    %v1637 = vadd.f32 %v1509, 1.0
    %v1638 = vadd.f32 %v1510, 1.0
    %v1639 = vadd.f32 %v1511, 1.0
    %v1640 = vadd.f32 %v1512, 1.0
    %v1641 = vadd.f32 %v1513, 1.0
    %v1642 = vadd.f32 %v1514, 1.0
    %v1643 = vadd.f32 %v1515, 1.0
    %v1644 = vadd.f32 %v1516, 1.0
    %v1645 = vadd.f32 %v1517, 1.0
    %v1646 = vadd.f32 %v1518, 1.0
    %v1647 = vadd.f32 %v1519, 1.0
    %v1648 = vadd.f32 %v1520, 1.0
    %v1649 = vadd.f32 %v1521, 1.0
    %v1650 = vadd.f32 %v1522, 1.0
    %v1651 = vadd.f32 %v1523, 1.0
    %v1652 = vadd.f32 %v1524, 1.0
    %v1653 = vadd.f32 %v1525, 1.0
    %v1654 = vadd.f32 %v1526, 1.0
    %v1655 = vadd.f32 %v1527, 1.0
    %v1656 = vadd.f32 %v1528, 1.0
    %v1657 = vadd.f32 %v1529, 1.0
    %v1658 = vadd.f32 %v1530, 1.0
    %v1659 = vadd.f32 %v1531, 1.0
    %v1660 = vadd.f32 %v1532, 1.0
    %v1661 = vadd.f32 %v1533, 1.0
    %v1662 = vadd.f32 %v1534, 1.0
    %v1663 = vadd.f32 %v1535, 1.0
    %v1664 = vadd.f32 %v1536, 1.0
    %v1665 = vadd.f32 %v1537, 1.0
    %v1666 = vadd.f32 %v1538, 1.0
    %v1667 = vadd.f32 %v1539, 1.0
    %v1668 = vadd.f32 %v1540, 1.0
    %v1669 = vadd.f32 %v1541, 1.0
    %v1670 = vadd.f32 %v1542, 1.0
    %v1671 = vadd.f32 %v1543, 1.0
    %v1672 = vadd.f32 %v1544, 1.0
    %v1673 = vadd.f32 %v1545, 1.0
    %v1674 = vadd.f32 %v1546, 1.0
    %v1675 = vadd.f32 %v1547, 1.0
    %v1676 = vadd.f32 %v1548, 1.0
    %v1677 = vadd.f32 %v1549, 1.0
    %v1678 = vadd.f32 %v1550, 1.0
    %v1679 = vadd.f32 %v1551, 1.0
    %v1680 = vadd.f32 %v1552, 1.0
    %v1681 = vadd.f32 %v1553, 1.0
    %v1682 = vadd.f32 %v1554, 1.0
    %v1683 = vadd.f32 %v1555, 1.0
    %v1684 = vadd.f32 %v1556, 1.0
    %v1685 = vadd.f32 %v1557, 1.0
    %v1686 = vadd.f32 %v1558, 1.0
    %v1687 = vadd.f32 %v1559, 1.0
    %v1688 = vadd.f32 %v1560, 1.0
    %v1689 = vadd.f32 %v1561, 1.0
    %v1690 = vadd.f32 %v1562, 1.0
    %v1691 = vadd.f32 %v1563, 1.0
    %v1692 = vadd.f32 %v1564, 1.0
    %v1693 = vadd.f32 %v1565, 1.0
    %v1694 = vadd.f32 %v1566, 1.0
    %v1695 = vadd.f32 %v1567, 1.0
    %v1696 = vadd.f32 %v1568, 1.0
    %v1697 = vadd.f32 %v1569, 1.0
    %v1698 = vadd.f32 %v1570, 1.0
    %v1699 = vadd.f32 %v1571, 1.0
    %v1700 = vadd.f32 %v1572, 1.0
    %v1701 = vadd.f32 %v1573, 1.0
    %v1702 = vadd.f32 %v1574, 1.0
    %v1703 = vadd.f32 %v1575, 1.0
    %v1704 = vadd.f32 %v1576, 1.0
    %v1705 = vadd.f32 %v1577, 1.0
    %v1706 = vadd.f32 %v1578, 1.0
    %v1707 = vadd.f32 %v1579, 1.0
    %v1708 = vadd.f32 %v1580, 1.0
    %v1709 = vadd.f32 %v1581, 1.0
    %v1710 = vadd.f32 %v1582, 1.0
    %v1711 = vadd.f32 %v1583, 1.0
    %v1712 = vmul.f32 %v688, %v1584
    %v1713 = vmul.f32 %v689, %v1585
    %v1714 = vmul.f32 %v690, %v1586
    %v1715 = vmul.f32 %v691, %v1587
    %v1716 = vmul.f32 %v692, %v1588
    %v1717 = vmul.f32 %v693, %v1589
    %v1718 = vmul.f32 %v694, %v1590
    %v1719 = vmul.f32 %v695, %v1591
    %v1720 = vmul.f32 %v696, %v1592
    %v1721 = vmul.f32 %v697, %v1593
    %v1722 = vmul.f32 %v698, %v1594
    %v1723 = vmul.f32 %v699, %v1595
    %v1724 = vmul.f32 %v700, %v1596
    %v1725 = vmul.f32 %v701, %v1597
    %v1726 = vmul.f32 %v702, %v1598
    %v1727 = vmul.f32 %v703, %v1599
    %v1728 = vmul.f32 %v704, %v1600
    %v1729 = vmul.f32 %v705, %v1601
    %v1730 = vmul.f32 %v706, %v1602
    %v1731 = vmul.f32 %v707, %v1603
    %v1732 = vmul.f32 %v708, %v1604
    %v1733 = vmul.f32 %v709, %v1605
    %v1734 = vmul.f32 %v710, %v1606
    %v1735 = vmul.f32 %v711, %v1607
    %v1736 = vmul.f32 %v712, %v1608
    %v1737 = vmul.f32 %v713, %v1609
    %v1738 = vmul.f32 %v714, %v1610
    %v1739 = vmul.f32 %v715, %v1611
    %v1740 = vmul.f32 %v716, %v1612
    %v1741 = vmul.f32 %v717, %v1613
    %v1742 = vmul.f32 %v718, %v1614
    %v1743 = vmul.f32 %v719, %v1615
    %v1744 = vmul.f32 %v720, %v1616
    %v1745 = vmul.f32 %v721, %v1617
    %v1746 = vmul.f32 %v722, %v1618
    %v1747 = vmul.f32 %v723, %v1619
    %v1748 = vmul.f32 %v724, %v1620
    %v1749 = vmul.f32 %v725, %v1621
    %v1750 = vmul.f32 %v726, %v1622
    %v1751 = vmul.f32 %v727, %v1623
    %v1752 = vmul.f32 %v728, %v1624
    %v1753 = vmul.f32 %v729, %v1625
    %v1754 = vmul.f32 %v730, %v1626
    %v1755 = vmul.f32 %v731, %v1627
    %v1756 = vmul.f32 %v732, %v1628
    %v1757 = vmul.f32 %v733, %v1629
    %v1758 = vmul.f32 %v734, %v1630
    %v1759 = vmul.f32 %v735, %v1631
    %v1760 = vmul.f32 %v736, %v1632
    %v1761 = vmul.f32 %v737, %v1633
    %v1762 = vmul.f32 %v738, %v1634
    %v1763 = vmul.f32 %v739, %v1635
    %v1764 = vmul.f32 %v740, %v1636
    %v1765 = vmul.f32 %v741, %v1637
    %v1766 = vmul.f32 %v742, %v1638
    %v1767 = vmul.f32 %v743, %v1639
    %v1768 = vmul.f32 %v744, %v1640
    %v1769 = vmul.f32 %v745, %v1641
    %v1770 = vmul.f32 %v746, %v1642
    %v1771 = vmul.f32 %v747, %v1643
    %v1772 = vmul.f32 %v748, %v1644
    %v1773 = vmul.f32 %v749, %v1645
    %v1774 = vmul.f32 %v750, %v1646
    %v1775 = vmul.f32 %v751, %v1647
    %v1776 = vmul.f32 %v752, %v1648
    %v1777 = vmul.f32 %v753, %v1649
    %v1778 = vmul.f32 %v754, %v1650
    %v1779 = vmul.f32 %v755, %v1651
    %v1780 = vmul.f32 %v756, %v1652
    %v1781 = vmul.f32 %v757, %v1653
    %v1782 = vmul.f32 %v758, %v1654
    %v1783 = vmul.f32 %v759, %v1655
    %v1784 = vmul.f32 %v760, %v1656
    %v1785 = vmul.f32 %v761, %v1657
    %v1786 = vmul.f32 %v762, %v1658
    %v1787 = vmul.f32 %v763, %v1659
    %v1788 = vmul.f32 %v764, %v1660
    %v1789 = vmul.f32 %v765, %v1661
    %v1790 = vmul.f32 %v766, %v1662
    %v1791 = vmul.f32 %v767, %v1663
    %v1792 = vmul.f32 %v768, %v1664
    %v1793 = vmul.f32 %v769, %v1665
    %v1794 = vmul.f32 %v770, %v1666
    %v1795 = vmul.f32 %v771, %v1667
    %v1796 = vmul.f32 %v772, %v1668
    %v1797 = vmul.f32 %v773, %v1669
    %v1798 = vmul.f32 %v774, %v1670
    %v1799 = vmul.f32 %v775, %v1671
    %v1800 = vmul.f32 %v776, %v1672
    %v1801 = vmul.f32 %v777, %v1673
    %v1802 = vmul.f32 %v778, %v1674
    %v1803 = vmul.f32 %v779, %v1675
    %v1804 = vmul.f32 %v780, %v1676
    %v1805 = vmul.f32 %v781, %v1677
    %v1806 = vmul.f32 %v782, %v1678
    %v1807 = vmul.f32 %v783, %v1679
    %v1808 = vmul.f32 %v784, %v1680
    %v1809 = vmul.f32 %v785, %v1681
    %v1810 = vmul.f32 %v786, %v1682
    %v1811 = vmul.f32 %v787, %v1683
    %v1812 = vmul.f32 %v788, %v1684
    %v1813 = vmul.f32 %v789, %v1685
    %v1814 = vmul.f32 %v790, %v1686
    %v1815 = vmul.f32 %v791, %v1687
    %v1816 = vmul.f32 %v792, %v1688
    %v1817 = vmul.f32 %v793, %v1689
    %v1818 = vmul.f32 %v794, %v1690
    %v1819 = vmul.f32 %v795, %v1691
    %v1820 = vmul.f32 %v796, %v1692
    %v1821 = vmul.f32 %v797, %v1693
    %v1822 = vmul.f32 %v798, %v1694
    %v1823 = vmul.f32 %v799, %v1695
    %v1824 = vmul.f32 %v800, %v1696
    %v1825 = vmul.f32 %v801, %v1697
    %v1826 = vmul.f32 %v802, %v1698
    %v1827 = vmul.f32 %v803, %v1699
    %v1828 = vmul.f32 %v804, %v1700
    %v1829 = vmul.f32 %v805, %v1701
    %v1830 = vmul.f32 %v806, %v1702
    %v1831 = vmul.f32 %v807, %v1703
    %v1832 = vmul.f32 %v808, %v1704
    %v1833 = vmul.f32 %v809, %v1705
    %v1834 = vmul.f32 %v810, %v1706
    %v1835 = vmul.f32 %v811, %v1707
    %v1836 = vmul.f32 %v812, %v1708
    %v1837 = vmul.f32 %v813, %v1709
    %v1838 = vmul.f32 %v814, %v1710
    %v1839 = vmul.f32 %v815, %v1711
    %v1840 = vld [vmem:[#allocation2] sm:$0xff]
    %v1841 = vld [vmem:[#allocation2 + $0x8] sm:$0xff]
    %v1842 = vld [vmem:[#allocation2 + $0x10] sm:$0xff]
    %v1843 = vld [vmem:[#allocation2 + $0x18] sm:$0xff]
    %v1844 = vld [vmem:[#allocation2 + $0x20] sm:$0xff]
    %v1845 = vld [vmem:[#allocation2 + $0x28] sm:$0xff]
    %v1846 = vld [vmem:[#allocation2 + $0x30] sm:$0xff]
    %v1847 = vld [vmem:[#allocation2 + $0x38] sm:$0xff]
    %v1848 = vld [vmem:[#allocation2 + $0x40] sm:$0xff]
    %v1849 = vld [vmem:[#allocation2 + $0x48] sm:$0xff]
    %v1850 = vld [vmem:[#allocation2 + $0x50] sm:$0xff]
    %v1851 = vld [vmem:[#allocation2 + $0x58] sm:$0xff]
    %v1852 = vld [vmem:[#allocation2 + $0x60] sm:$0xff]
    %v1853 = vld [vmem:[#allocation2 + $0x68] sm:$0xff]
    %v1854 = vld [vmem:[#allocation2 + $0x70] sm:$0xff]
    %v1855 = vld [vmem:[#allocation2 + $0x78] sm:$0xff]
    %v1856 = vld [vmem:[#allocation2 + $0x80] sm:$0xff]
    %v1857 = vld [vmem:[#allocation2 + $0x88] sm:$0xff]
    %v1858 = vld [vmem:[#allocation2 + $0x90] sm:$0xff]
    %v1859 = vld [vmem:[#allocation2 + $0x98] sm:$0xff]
    %v1860 = vld [vmem:[#allocation2 + $0xa0] sm:$0xff]
    %v1861 = vld [vmem:[#allocation2 + $0xa8] sm:$0xff]
    %v1862 = vld [vmem:[#allocation2 + $0xb0] sm:$0xff]
    %v1863 = vld [vmem:[#allocation2 + $0xb8] sm:$0xff]
    %v1864 = vld [vmem:[#allocation2 + $0xc0] sm:$0xff]
    %v1865 = vld [vmem:[#allocation2 + $0xc8] sm:$0xff]
    %v1866 = vld [vmem:[#allocation2 + $0xd0] sm:$0xff]
    %v1867 = vld [vmem:[#allocation2 + $0xd8] sm:$0xff]
    %v1868 = vld [vmem:[#allocation2 + $0xe0] sm:$0xff]
    %v1869 = vld [vmem:[#allocation2 + $0xe8] sm:$0xff]
    %v1870 = vld [vmem:[#allocation2 + $0xf0] sm:$0xff]
    %v1871 = vld [vmem:[#allocation2 + $0xf8] sm:$0xff]
    %v1872 = vld [vmem:[#allocation2 + $0x100] sm:$0xff]
    %v1873 = vld [vmem:[#allocation2 + $0x108] sm:$0xff]
    %v1874 = vld [vmem:[#allocation2 + $0x110] sm:$0xff]
    %v1875 = vld [vmem:[#allocation2 + $0x118] sm:$0xff]
    %v1876 = vld [vmem:[#allocation2 + $0x120] sm:$0xff]
    %v1877 = vld [vmem:[#allocation2 + $0x128] sm:$0xff]
    %v1878 = vld [vmem:[#allocation2 + $0x130] sm:$0xff]
    %v1879 = vld [vmem:[#allocation2 + $0x138] sm:$0xff]
    %v1880 = vld [vmem:[#allocation2 + $0x140] sm:$0xff]
    %v1881 = vld [vmem:[#allocation2 + $0x148] sm:$0xff]
    %v1882 = vld [vmem:[#allocation2 + $0x150] sm:$0xff]
    %v1883 = vld [vmem:[#allocation2 + $0x158] sm:$0xff]
    %v1884 = vld [vmem:[#allocation2 + $0x160] sm:$0xff]
    %v1885 = vld [vmem:[#allocation2 + $0x168] sm:$0xff]
    %v1886 = vld [vmem:[#allocation2 + $0x170] sm:$0xff]
    %v1887 = vld [vmem:[#allocation2 + $0x178] sm:$0xff]
    %v1888 = vld [vmem:[#allocation2 + $0x180] sm:$0xff]
    %v1889 = vld [vmem:[#allocation2 + $0x188] sm:$0xff]
    %v1890 = vld [vmem:[#allocation2 + $0x190] sm:$0xff]
    %v1891 = vld [vmem:[#allocation2 + $0x198] sm:$0xff]
    %v1892 = vld [vmem:[#allocation2 + $0x1a0] sm:$0xff]
    %v1893 = vld [vmem:[#allocation2 + $0x1a8] sm:$0xff]
    %v1894 = vld [vmem:[#allocation2 + $0x1b0] sm:$0xff]
    %v1895 = vld [vmem:[#allocation2 + $0x1b8] sm:$0xff]
    %v1896 = vld [vmem:[#allocation2 + $0x1c0] sm:$0xff]
    %v1897 = vld [vmem:[#allocation2 + $0x1c8] sm:$0xff]
    %v1898 = vld [vmem:[#allocation2 + $0x1d0] sm:$0xff]
    %v1899 = vld [vmem:[#allocation2 + $0x1d8] sm:$0xff]
    %v1900 = vld [vmem:[#allocation2 + $0x1e0] sm:$0xff]
    %v1901 = vld [vmem:[#allocation2 + $0x1e8] sm:$0xff]
    %v1902 = vld [vmem:[#allocation2 + $0x1f0] sm:$0xff]
    %v1903 = vld [vmem:[#allocation2 + $0x1f8] sm:$0xff]
    %v1904 = vpack.c.bf16 %v1714, %v1712
    %v1905 = vpack.c.bf16 %v1715, %v1713
    %v1906 = vpack.c.bf16 %v1718, %v1716
    %v1907 = vpack.c.bf16 %v1719, %v1717
    %v1908 = vpack.c.bf16 %v1722, %v1720
    %v1909 = vpack.c.bf16 %v1723, %v1721
    %v1910 = vpack.c.bf16 %v1726, %v1724
    %v1911 = vpack.c.bf16 %v1727, %v1725
    %v1912 = vpack.c.bf16 %v1730, %v1728
    %v1913 = vpack.c.bf16 %v1731, %v1729
    %v1914 = vpack.c.bf16 %v1734, %v1732
    %v1915 = vpack.c.bf16 %v1735, %v1733
    %v1916 = vpack.c.bf16 %v1738, %v1736
    %v1917 = vpack.c.bf16 %v1739, %v1737
    %v1918 = vpack.c.bf16 %v1742, %v1740
    %v1919 = vpack.c.bf16 %v1743, %v1741
    %v1920 = vpack.c.bf16 %v1746, %v1744
    %v1921 = vpack.c.bf16 %v1747, %v1745
    %v1922 = vpack.c.bf16 %v1750, %v1748
    %v1923 = vpack.c.bf16 %v1751, %v1749
    %v1924 = vpack.c.bf16 %v1754, %v1752
    %v1925 = vpack.c.bf16 %v1755, %v1753
    %v1926 = vpack.c.bf16 %v1758, %v1756
    %v1927 = vpack.c.bf16 %v1759, %v1757
    %v1928 = vpack.c.bf16 %v1762, %v1760
    %v1929 = vpack.c.bf16 %v1763, %v1761
    %v1930 = vpack.c.bf16 %v1766, %v1764
    %v1931 = vpack.c.bf16 %v1767, %v1765
    %v1932 = vpack.c.bf16 %v1770, %v1768
    %v1933 = vpack.c.bf16 %v1771, %v1769
    %v1934 = vpack.c.bf16 %v1774, %v1772
    %v1935 = vpack.c.bf16 %v1775, %v1773
    %v1936 = vpack.c.bf16 %v1778, %v1776
    %v1937 = vpack.c.bf16 %v1779, %v1777
    %v1938 = vpack.c.bf16 %v1782, %v1780
    %v1939 = vpack.c.bf16 %v1783, %v1781
    %v1940 = vpack.c.bf16 %v1786, %v1784
    %v1941 = vpack.c.bf16 %v1787, %v1785
    %v1942 = vpack.c.bf16 %v1790, %v1788
    %v1943 = vpack.c.bf16 %v1791, %v1789
    %v1944 = vpack.c.bf16 %v1794, %v1792
    %v1945 = vpack.c.bf16 %v1795, %v1793
    %v1946 = vpack.c.bf16 %v1798, %v1796
    %v1947 = vpack.c.bf16 %v1799, %v1797
    %v1948 = vpack.c.bf16 %v1802, %v1800
    %v1949 = vpack.c.bf16 %v1803, %v1801
    %v1950 = vpack.c.bf16 %v1806, %v1804
    %v1951 = vpack.c.bf16 %v1807, %v1805
    %v1952 = vpack.c.bf16 %v1810, %v1808
    %v1953 = vpack.c.bf16 %v1811, %v1809
    %v1954 = vpack.c.bf16 %v1814, %v1812
    %v1955 = vpack.c.bf16 %v1815, %v1813
    %v1956 = vpack.c.bf16 %v1818, %v1816
    %v1957 = vpack.c.bf16 %v1819, %v1817
    %v1958 = vpack.c.bf16 %v1822, %v1820
    %v1959 = vpack.c.bf16 %v1823, %v1821
    %v1960 = vpack.c.bf16 %v1826, %v1824
    %v1961 = vpack.c.bf16 %v1827, %v1825
    %v1962 = vpack.c.bf16 %v1830, %v1828
    %v1963 = vpack.c.bf16 %v1831, %v1829
    %v1964 = vpack.c.bf16 %v1834, %v1832
    %v1965 = vpack.c.bf16 %v1835, %v1833
    %v1966 = vpack.c.bf16 %v1838, %v1836
    %v1967 = vpack.c.bf16 %v1839, %v1837
    %v1968 = vld [vmem:[#allocation8] sm:$0xf]
    %v1969 = vld [vmem:[#allocation8 + $0x4] sm:$0xf]
    %v1970 = vld [vmem:[#allocation8 + $0x8] sm:$0xf]
    %v1971 = vld [vmem:[#allocation8 + $0xc] sm:$0xf]
    %v1972 = vld [vmem:[#allocation8 + $0x10] sm:$0xf]
    %v1973 = vld [vmem:[#allocation8 + $0x14] sm:$0xf]
    %v1974 = vld [vmem:[#allocation8 + $0x18] sm:$0xf]
    %v1975 = vld [vmem:[#allocation8 + $0x1c] sm:$0xf]
    %v1976 = vld [vmem:[#allocation8 + $0x20] sm:$0xf]
    %v1977 = vld [vmem:[#allocation8 + $0x24] sm:$0xf]
    %v1978 = vld [vmem:[#allocation8 + $0x28] sm:$0xf]
    %v1979 = vld [vmem:[#allocation8 + $0x2c] sm:$0xf]
    %v1980 = vld [vmem:[#allocation8 + $0x30] sm:$0xf]
    %v1981 = vld [vmem:[#allocation8 + $0x34] sm:$0xf]
    %v1982 = vld [vmem:[#allocation8 + $0x38] sm:$0xf]
    %v1983 = vld [vmem:[#allocation8 + $0x3c] sm:$0xf]
    %v1984 = vld [vmem:[#allocation8 + $0x40] sm:$0xf]
    %v1985 = vld [vmem:[#allocation8 + $0x44] sm:$0xf]
    %v1986 = vld [vmem:[#allocation8 + $0x48] sm:$0xf]
    %v1987 = vld [vmem:[#allocation8 + $0x4c] sm:$0xf]
    %v1988 = vld [vmem:[#allocation8 + $0x50] sm:$0xf]
    %v1989 = vld [vmem:[#allocation8 + $0x54] sm:$0xf]
    %v1990 = vld [vmem:[#allocation8 + $0x58] sm:$0xf]
    %v1991 = vld [vmem:[#allocation8 + $0x5c] sm:$0xf]
    %v1992 = vld [vmem:[#allocation8 + $0x60] sm:$0xf]
    %v1993 = vld [vmem:[#allocation8 + $0x64] sm:$0xf]
    %v1994 = vld [vmem:[#allocation8 + $0x68] sm:$0xf]
    %v1995 = vld [vmem:[#allocation8 + $0x6c] sm:$0xf]
    %v1996 = vld [vmem:[#allocation8 + $0x70] sm:$0xf]
    %v1997 = vld [vmem:[#allocation8 + $0x74] sm:$0xf]
    %v1998 = vld [vmem:[#allocation8 + $0x78] sm:$0xf]
    %v1999 = vld [vmem:[#allocation8 + $0x7c] sm:$0xf]
    %v2032 = vunpack.c.l.b16 %v1968
    %v2033 = vunpack.c.l.b16 %v1969
    %v2034 = vunpack.c.l.b16 %v1970
    %v2035 = vunpack.c.l.b16 %v1971
    %v2036 = vunpack.c.l.b16 %v1972
    %v2037 = vunpack.c.l.b16 %v1973
    %v2038 = vunpack.c.l.b16 %v1974
    %v2039 = vunpack.c.l.b16 %v1975
    %v2040 = vunpack.c.l.b16 %v1976
    %v2041 = vunpack.c.l.b16 %v1977
    %v2042 = vunpack.c.l.b16 %v1978
    %v2043 = vunpack.c.l.b16 %v1979
    %v2044 = vunpack.c.l.b16 %v1980
    %v2045 = vunpack.c.l.b16 %v1981
    %v2046 = vunpack.c.l.b16 %v1982
    %v2047 = vunpack.c.l.b16 %v1983
    %v2048 = vunpack.c.l.b16 %v1984
    %v2049 = vunpack.c.l.b16 %v1985
    %v2050 = vunpack.c.l.b16 %v1986
    %v2051 = vunpack.c.l.b16 %v1987
    %v2052 = vunpack.c.l.b16 %v1988
    %v2053 = vunpack.c.l.b16 %v1989
    %v2054 = vunpack.c.l.b16 %v1990
    %v2055 = vunpack.c.l.b16 %v1991
    %v2056 = vunpack.c.l.b16 %v1992
    %v2057 = vunpack.c.l.b16 %v1993
    %v2058 = vunpack.c.l.b16 %v1994
    %v2059 = vunpack.c.l.b16 %v1995
    %v2060 = vunpack.c.l.b16 %v1996
    %v2061 = vunpack.c.l.b16 %v1997
    %v2062 = vunpack.c.l.b16 %v1998
    %v2063 = vunpack.c.l.b16 %v1999
    %v2064 = vpack.c.b16 %v2033, %v2032
    %v2065 = vpack.c.b16 %v2035, %v2034
    %v2066 = vpack.c.b16 %v2037, %v2036
    %v2067 = vpack.c.b16 %v2039, %v2038
    %v2068 = vpack.c.b16 %v2041, %v2040
    %v2069 = vpack.c.b16 %v2043, %v2042
    %v2070 = vpack.c.b16 %v2045, %v2044
    %v2071 = vpack.c.b16 %v2047, %v2046
    %v2072 = vpack.c.b16 %v2049, %v2048
    %v2073 = vpack.c.b16 %v2051, %v2050
    %v2074 = vpack.c.b16 %v2053, %v2052
    %v2075 = vpack.c.b16 %v2055, %v2054
    %v2076 = vpack.c.b16 %v2057, %v2056
    %v2077 = vpack.c.b16 %v2059, %v2058
    %v2078 = vpack.c.b16 %v2061, %v2060
    %v2079 = vpack.c.b16 %v2063, %v2062
    %2096 = vmatprep.subr.bf16.mxu0 0
    %2097 = vmatpush1.bf16.msra.mxu0 %v2071
    %2098 = vmatprep.subr.bf16.mxu0 0
    %2099 = vmatpush1.bf16.msra.mxu0 %v2070
    %2100 = vmatprep.subr.bf16.mxu0 0
    %2101 = vmatpush1.bf16.msra.mxu0 %v2069
    %2102 = vmatprep.subr.bf16.mxu0 0
    %2103 = vmatpush1.bf16.msra.mxu0 %v2068
    %2104 = vmatprep.subr.bf16.mxu0 0
    %2105 = vmatpush1.bf16.msra.mxu0 %v2067
    %2106 = vmatprep.subr.bf16.mxu0 0
    %2107 = vmatpush1.bf16.msra.mxu0 %v2066
    %2108 = vmatprep.subr.bf16.mxu0 0
    %2109 = vmatpush1.bf16.msra.mxu0 %v2065
    %2110 = vmatprep.subr.bf16.mxu0 0
    %2111 = vmatpush1.bf16.msra.mxu0 %v2064
    %2112 = vmatprep.subr.bf16.mxu0 0
    %2113 = vmatpush2.bf16.msra.mxu0 %v2079
    %2114 = vmatprep.subr.bf16.mxu0 0
    %2115 = vmatpush2.bf16.msra.mxu0 %v2078
    %2116 = vmatprep.subr.bf16.mxu0 0
    %2117 = vmatpush2.bf16.msra.mxu0 %v2077
    %2118 = vmatprep.subr.bf16.mxu0 0
    %2119 = vmatpush2.bf16.msra.mxu0 %v2076
    %2120 = vmatprep.subr.bf16.mxu0 0
    %2121 = vmatpush2.bf16.msra.mxu0 %v2075
    %2122 = vmatprep.subr.bf16.mxu0 0
    %2123 = vmatpush2.bf16.msra.mxu0 %v2074
    %2124 = vmatprep.subr.bf16.mxu0 0
    %2125 = vmatpush2.bf16.msra.mxu0 %v2073
    %2126 = vmatprep.subr.bf16.mxu0 0
    %2127 = vmatpush2.bf16.msra.mxu0 %v2072
    %2128 = vmatprep.mubr.bf16.mxu0 %v1905
    %2129 = vmatmul.mubr.bf16.gmra.mxu0 %v1904
    %v2130 = vpop.f32.mrf.mxu0
    %v2131 = vadd.f32 0.0, %v2130
    %v2132 = vpop.f32.mrf.mxu0
    %v2133 = vpop.f32.mrf.mxu0
    %v2134 = vadd.f32 0.0, %v2133
    %v2135 = vpop.f32.mrf.mxu0
    %2136 = vmatprep.mubr.bf16.mxu0 %v1907
    %2137 = vmatmul.mubr.bf16.gmra.mxu0 %v1906
    %v2138 = vpop.f32.mrf.mxu0
    %v2139 = vadd.f32 0.0, %v2138
    %v2140 = vpop.f32.mrf.mxu0
    %v2141 = vpop.f32.mrf.mxu0
    %v2142 = vadd.f32 0.0, %v2141
    %v2143 = vpop.f32.mrf.mxu0
    %2144 = vmatprep.mubr.bf16.mxu0 %v1909
    %2145 = vmatmul.mubr.bf16.gmra.mxu0 %v1908
    %v2146 = vpop.f32.mrf.mxu0
    %v2147 = vadd.f32 0.0, %v2146
    %v2148 = vpop.f32.mrf.mxu0
    %v2149 = vpop.f32.mrf.mxu0
    %v2150 = vadd.f32 0.0, %v2149
    %v2151 = vpop.f32.mrf.mxu0
    %2152 = vmatprep.mubr.bf16.mxu0 %v1911
    %2153 = vmatmul.mubr.bf16.gmra.mxu0 %v1910
    %v2154 = vpop.f32.mrf.mxu0
    %v2155 = vadd.f32 0.0, %v2154
    %v2156 = vpop.f32.mrf.mxu0
    %v2157 = vpop.f32.mrf.mxu0
    %v2158 = vadd.f32 0.0, %v2157
    %v2159 = vpop.f32.mrf.mxu0
    %2160 = vmatprep.mubr.bf16.mxu0 %v1913
    %2161 = vmatmul.mubr.bf16.gmra.mxu0 %v1912
    %v2162 = vpop.f32.mrf.mxu0
    %v2163 = vadd.f32 0.0, %v2162
    %v2164 = vpop.f32.mrf.mxu0
    %v2165 = vpop.f32.mrf.mxu0
    %v2166 = vadd.f32 0.0, %v2165
    %v2167 = vpop.f32.mrf.mxu0
    %2168 = vmatprep.mubr.bf16.mxu0 %v1915
    %2169 = vmatmul.mubr.bf16.gmra.mxu0 %v1914
    %v2170 = vpop.f32.mrf.mxu0
    %v2171 = vadd.f32 0.0, %v2170
    %v2172 = vpop.f32.mrf.mxu0
    %v2173 = vpop.f32.mrf.mxu0
    %v2174 = vadd.f32 0.0, %v2173
    %v2175 = vpop.f32.mrf.mxu0
    %2176 = vmatprep.mubr.bf16.mxu0 %v1917
    %2177 = vmatmul.mubr.bf16.gmra.mxu0 %v1916
    %v2178 = vpop.f32.mrf.mxu0
    %v2179 = vadd.f32 0.0, %v2178
    %v2180 = vpop.f32.mrf.mxu0
    %v2181 = vpop.f32.mrf.mxu0
    %v2182 = vadd.f32 0.0, %v2181
    %v2183 = vpop.f32.mrf.mxu0
    %2184 = vmatprep.mubr.bf16.mxu0 %v1919
    %2185 = vmatmul.mubr.bf16.gmra.mxu0 %v1918
    %v2186 = vpop.f32.mrf.mxu0
    %v2187 = vadd.f32 0.0, %v2186
    %v2188 = vpop.f32.mrf.mxu0
    %v2189 = vpop.f32.mrf.mxu0
    %v2190 = vadd.f32 0.0, %v2189
    %v2191 = vpop.f32.mrf.mxu0
    %2192 = vmatprep.mubr.bf16.mxu0 %v1921
    %2193 = vmatmul.mubr.bf16.gmra.mxu0 %v1920
    %v2194 = vpop.f32.mrf.mxu0
    %v2195 = vadd.f32 0.0, %v2194
    %v2196 = vpop.f32.mrf.mxu0
    %v2197 = vpop.f32.mrf.mxu0
    %v2198 = vadd.f32 0.0, %v2197
    %v2199 = vpop.f32.mrf.mxu0
    %2200 = vmatprep.mubr.bf16.mxu0 %v1923
    %2201 = vmatmul.mubr.bf16.gmra.mxu0 %v1922
    %v2202 = vpop.f32.mrf.mxu0
    %v2203 = vadd.f32 0.0, %v2202
    %v2204 = vpop.f32.mrf.mxu0
    %v2205 = vpop.f32.mrf.mxu0
    %v2206 = vadd.f32 0.0, %v2205
    %v2207 = vpop.f32.mrf.mxu0
    %2208 = vmatprep.mubr.bf16.mxu0 %v1925
    %2209 = vmatmul.mubr.bf16.gmra.mxu0 %v1924
    %v2210 = vpop.f32.mrf.mxu0
    %v2211 = vadd.f32 0.0, %v2210
    %v2212 = vpop.f32.mrf.mxu0
    %v2213 = vpop.f32.mrf.mxu0
    %v2214 = vadd.f32 0.0, %v2213
    %v2215 = vpop.f32.mrf.mxu0
    %2216 = vmatprep.mubr.bf16.mxu0 %v1927
    %2217 = vmatmul.mubr.bf16.gmra.mxu0 %v1926
    %v2218 = vpop.f32.mrf.mxu0
    %v2219 = vadd.f32 0.0, %v2218
    %v2220 = vpop.f32.mrf.mxu0
    %v2221 = vpop.f32.mrf.mxu0
    %v2222 = vadd.f32 0.0, %v2221
    %v2223 = vpop.f32.mrf.mxu0
    %2224 = vmatprep.mubr.bf16.mxu0 %v1929
    %2225 = vmatmul.mubr.bf16.gmra.mxu0 %v1928
    %v2226 = vpop.f32.mrf.mxu0
    %v2227 = vadd.f32 0.0, %v2226
    %v2228 = vpop.f32.mrf.mxu0
    %v2229 = vpop.f32.mrf.mxu0
    %v2230 = vadd.f32 0.0, %v2229
    %v2231 = vpop.f32.mrf.mxu0
    %2232 = vmatprep.mubr.bf16.mxu0 %v1931
    %2233 = vmatmul.mubr.bf16.gmra.mxu0 %v1930
    %v2234 = vpop.f32.mrf.mxu0
    %v2235 = vadd.f32 0.0, %v2234
    %v2236 = vpop.f32.mrf.mxu0
    %v2237 = vpop.f32.mrf.mxu0
    %v2238 = vadd.f32 0.0, %v2237
    %v2239 = vpop.f32.mrf.mxu0
    %2240 = vmatprep.mubr.bf16.mxu0 %v1933
    %2241 = vmatmul.mubr.bf16.gmra.mxu0 %v1932
    %v2242 = vpop.f32.mrf.mxu0
    %v2243 = vadd.f32 0.0, %v2242
    %v2244 = vpop.f32.mrf.mxu0
    %v2245 = vpop.f32.mrf.mxu0
    %v2246 = vadd.f32 0.0, %v2245
    %v2247 = vpop.f32.mrf.mxu0
    %2248 = vmatprep.mubr.bf16.mxu0 %v1935
    %2249 = vmatmul.mubr.bf16.gmra.mxu0 %v1934
    %v2250 = vpop.f32.mrf.mxu0
    %v2251 = vadd.f32 0.0, %v2250
    %v2252 = vpop.f32.mrf.mxu0
    %v2253 = vpop.f32.mrf.mxu0
    %v2254 = vadd.f32 0.0, %v2253
    %v2255 = vpop.f32.mrf.mxu0
    %2256 = vmatprep.mubr.bf16.mxu0 %v1937
    %2257 = vmatmul.mubr.bf16.gmra.mxu0 %v1936
    %v2258 = vpop.f32.mrf.mxu0
    %v2259 = vadd.f32 0.0, %v2258
    %v2260 = vpop.f32.mrf.mxu0
    %v2261 = vpop.f32.mrf.mxu0
    %v2262 = vadd.f32 0.0, %v2261
    %v2263 = vpop.f32.mrf.mxu0
    %2264 = vmatprep.mubr.bf16.mxu0 %v1939
    %2265 = vmatmul.mubr.bf16.gmra.mxu0 %v1938
    %v2266 = vpop.f32.mrf.mxu0
    %v2267 = vadd.f32 0.0, %v2266
    %v2268 = vpop.f32.mrf.mxu0
    %v2269 = vpop.f32.mrf.mxu0
    %v2270 = vadd.f32 0.0, %v2269
    %v2271 = vpop.f32.mrf.mxu0
    %2272 = vmatprep.mubr.bf16.mxu0 %v1941
    %2273 = vmatmul.mubr.bf16.gmra.mxu0 %v1940
    %v2274 = vpop.f32.mrf.mxu0
    %v2275 = vadd.f32 0.0, %v2274
    %v2276 = vpop.f32.mrf.mxu0
    %v2277 = vpop.f32.mrf.mxu0
    %v2278 = vadd.f32 0.0, %v2277
    %v2279 = vpop.f32.mrf.mxu0
    %2280 = vmatprep.mubr.bf16.mxu0 %v1943
    %2281 = vmatmul.mubr.bf16.gmra.mxu0 %v1942
    %v2282 = vpop.f32.mrf.mxu0
    %v2283 = vadd.f32 0.0, %v2282
    %v2284 = vpop.f32.mrf.mxu0
    %v2285 = vpop.f32.mrf.mxu0
    %v2286 = vadd.f32 0.0, %v2285
    %v2287 = vpop.f32.mrf.mxu0
    %2288 = vmatprep.mubr.bf16.mxu0 %v1945
    %2289 = vmatmul.mubr.bf16.gmra.mxu0 %v1944
    %v2290 = vpop.f32.mrf.mxu0
    %v2291 = vadd.f32 0.0, %v2290
    %v2292 = vpop.f32.mrf.mxu0
    %v2293 = vpop.f32.mrf.mxu0
    %v2294 = vadd.f32 0.0, %v2293
    %v2295 = vpop.f32.mrf.mxu0
    %2296 = vmatprep.mubr.bf16.mxu0 %v1947
    %2297 = vmatmul.mubr.bf16.gmra.mxu0 %v1946
    %v2298 = vpop.f32.mrf.mxu0
    %v2299 = vadd.f32 0.0, %v2298
    %v2300 = vpop.f32.mrf.mxu0
    %v2301 = vpop.f32.mrf.mxu0
    %v2302 = vadd.f32 0.0, %v2301
    %v2303 = vpop.f32.mrf.mxu0
    %2304 = vmatprep.mubr.bf16.mxu0 %v1949
    %2305 = vmatmul.mubr.bf16.gmra.mxu0 %v1948
    %v2306 = vpop.f32.mrf.mxu0
    %v2307 = vadd.f32 0.0, %v2306
    %v2308 = vpop.f32.mrf.mxu0
    %v2309 = vpop.f32.mrf.mxu0
    %v2310 = vadd.f32 0.0, %v2309
    %v2311 = vpop.f32.mrf.mxu0
    %2312 = vmatprep.mubr.bf16.mxu0 %v1951
    %2313 = vmatmul.mubr.bf16.gmra.mxu0 %v1950
    %v2314 = vpop.f32.mrf.mxu0
    %v2315 = vadd.f32 0.0, %v2314
    %v2316 = vpop.f32.mrf.mxu0
    %v2317 = vpop.f32.mrf.mxu0
    %v2318 = vadd.f32 0.0, %v2317
    %v2319 = vpop.f32.mrf.mxu0
    %2320 = vmatprep.mubr.bf16.mxu0 %v1953
    %2321 = vmatmul.mubr.bf16.gmra.mxu0 %v1952
    %v2322 = vpop.f32.mrf.mxu0
    %v2323 = vadd.f32 0.0, %v2322
    %v2324 = vpop.f32.mrf.mxu0
    %v2325 = vpop.f32.mrf.mxu0
    %v2326 = vadd.f32 0.0, %v2325
    %v2327 = vpop.f32.mrf.mxu0
    %2328 = vmatprep.mubr.bf16.mxu0 %v1955
    %2329 = vmatmul.mubr.bf16.gmra.mxu0 %v1954
    %v2330 = vpop.f32.mrf.mxu0
    %v2331 = vadd.f32 0.0, %v2330
    %v2332 = vpop.f32.mrf.mxu0
    %v2333 = vpop.f32.mrf.mxu0
    %v2334 = vadd.f32 0.0, %v2333
    %v2335 = vpop.f32.mrf.mxu0
    %2336 = vmatprep.mubr.bf16.mxu0 %v1957
    %2337 = vmatmul.mubr.bf16.gmra.mxu0 %v1956
    %v2338 = vpop.f32.mrf.mxu0
    %v2339 = vadd.f32 0.0, %v2338
    %v2340 = vpop.f32.mrf.mxu0
    %v2341 = vpop.f32.mrf.mxu0
    %v2342 = vadd.f32 0.0, %v2341
    %v2343 = vpop.f32.mrf.mxu0
    %2344 = vmatprep.mubr.bf16.mxu0 %v1959
    %2345 = vmatmul.mubr.bf16.gmra.mxu0 %v1958
    %v2346 = vpop.f32.mrf.mxu0
    %v2347 = vadd.f32 0.0, %v2346
    %v2348 = vpop.f32.mrf.mxu0
    %v2349 = vpop.f32.mrf.mxu0
    %v2350 = vadd.f32 0.0, %v2349
    %v2351 = vpop.f32.mrf.mxu0
    %2352 = vmatprep.mubr.bf16.mxu0 %v1961
    %2353 = vmatmul.mubr.bf16.gmra.mxu0 %v1960
    %v2354 = vpop.f32.mrf.mxu0
    %v2355 = vadd.f32 0.0, %v2354
    %v2356 = vpop.f32.mrf.mxu0
    %v2357 = vpop.f32.mrf.mxu0
    %v2358 = vadd.f32 0.0, %v2357
    %v2359 = vpop.f32.mrf.mxu0
    %2360 = vmatprep.mubr.bf16.mxu0 %v1963
    %2361 = vmatmul.mubr.bf16.gmra.mxu0 %v1962
    %v2362 = vpop.f32.mrf.mxu0
    %v2363 = vadd.f32 0.0, %v2362
    %v2364 = vpop.f32.mrf.mxu0
    %v2365 = vpop.f32.mrf.mxu0
    %v2366 = vadd.f32 0.0, %v2365
    %v2367 = vpop.f32.mrf.mxu0
    %2368 = vmatprep.mubr.bf16.mxu0 %v1965
    %2369 = vmatmul.mubr.bf16.gmra.mxu0 %v1964
    %v2370 = vpop.f32.mrf.mxu0
    %v2371 = vadd.f32 0.0, %v2370
    %v2372 = vpop.f32.mrf.mxu0
    %v2373 = vpop.f32.mrf.mxu0
    %v2374 = vadd.f32 0.0, %v2373
    %v2375 = vpop.f32.mrf.mxu0
    %2376 = vmatprep.mubr.bf16.mxu0 %v1967
    %2377 = vmatmul.mubr.bf16.gmra.mxu0 %v1966
    %v2378 = vpop.f32.mrf.mxu0
    %v2379 = vadd.f32 0.0, %v2378
    %v2380 = vpop.f32.mrf.mxu0
    %v2381 = vpop.f32.mrf.mxu0
    %v2382 = vadd.f32 0.0, %v2381
    %v2383 = vpop.f32.mrf.mxu0
    %2384 = vdwg.mxu0
    %v2385 = vadd.f32 %v1840, %v2131
    %v2386 = vadd.f32 %v1841, %v2134
    %v2387 = vadd.f32 %v1842, %v2139
    %v2388 = vadd.f32 %v1843, %v2142
    %v2389 = vadd.f32 %v1844, %v2147
    %v2390 = vadd.f32 %v1845, %v2150
    %v2391 = vadd.f32 %v1846, %v2155
    %v2392 = vadd.f32 %v1847, %v2158
    %v2393 = vadd.f32 %v1848, %v2163
    %v2394 = vadd.f32 %v1849, %v2166
    %v2395 = vadd.f32 %v1850, %v2171
    %v2396 = vadd.f32 %v1851, %v2174
    %v2397 = vadd.f32 %v1852, %v2179
    %v2398 = vadd.f32 %v1853, %v2182
    %v2399 = vadd.f32 %v1854, %v2187
    %v2400 = vadd.f32 %v1855, %v2190
    %v2401 = vadd.f32 %v1856, %v2195
    %v2402 = vadd.f32 %v1857, %v2198
    %v2403 = vadd.f32 %v1858, %v2203
    %v2404 = vadd.f32 %v1859, %v2206
    %v2405 = vadd.f32 %v1860, %v2211
    %v2406 = vadd.f32 %v1861, %v2214
    %v2407 = vadd.f32 %v1862, %v2219
    %v2408 = vadd.f32 %v1863, %v2222
    %v2409 = vadd.f32 %v1864, %v2227
    %v2410 = vadd.f32 %v1865, %v2230
    %v2411 = vadd.f32 %v1866, %v2235
    %v2412 = vadd.f32 %v1867, %v2238
    %v2413 = vadd.f32 %v1868, %v2243
    %v2414 = vadd.f32 %v1869, %v2246
    %v2415 = vadd.f32 %v1870, %v2251
    %v2416 = vadd.f32 %v1871, %v2254
    %v2417 = vadd.f32 %v1872, %v2259
    %v2418 = vadd.f32 %v1873, %v2262
    %v2419 = vadd.f32 %v1874, %v2267
    %v2420 = vadd.f32 %v1875, %v2270
    %v2421 = vadd.f32 %v1876, %v2275
    %v2422 = vadd.f32 %v1877, %v2278
    %v2423 = vadd.f32 %v1878, %v2283
    %v2424 = vadd.f32 %v1879, %v2286
    %v2425 = vadd.f32 %v1880, %v2291
    %v2426 = vadd.f32 %v1881, %v2294
    %v2427 = vadd.f32 %v1882, %v2299
    %v2428 = vadd.f32 %v1883, %v2302
    %v2429 = vadd.f32 %v1884, %v2307
    %v2430 = vadd.f32 %v1885, %v2310
    %v2431 = vadd.f32 %v1886, %v2315
    %v2432 = vadd.f32 %v1887, %v2318
    %v2433 = vadd.f32 %v1888, %v2323
    %v2434 = vadd.f32 %v1889, %v2326
    %v2435 = vadd.f32 %v1890, %v2331
    %v2436 = vadd.f32 %v1891, %v2334
    %v2437 = vadd.f32 %v1892, %v2339
    %v2438 = vadd.f32 %v1893, %v2342
    %v2439 = vadd.f32 %v1894, %v2347
    %v2440 = vadd.f32 %v1895, %v2350
    %v2441 = vadd.f32 %v1896, %v2355
    %v2442 = vadd.f32 %v1897, %v2358
    %v2443 = vadd.f32 %v1898, %v2363
    %v2444 = vadd.f32 %v1899, %v2366
    %v2445 = vadd.f32 %v1900, %v2371
    %v2446 = vadd.f32 %v1901, %v2374
    %v2447 = vadd.f32 %v1902, %v2379
    %v2448 = vadd.f32 %v1903, %v2382
    %2449 = vst [vmem:[#allocation2] sm:$0xff] %v2385
    %2450 = vst [vmem:[#allocation2 + $0x8] sm:$0xff] %v2386
    %2451 = vst [vmem:[#allocation2 + $0x10] sm:$0xff] %v2387
    %2452 = vst [vmem:[#allocation2 + $0x18] sm:$0xff] %v2388
    %2453 = vst [vmem:[#allocation2 + $0x20] sm:$0xff] %v2389
    %2454 = vst [vmem:[#allocation2 + $0x28] sm:$0xff] %v2390
    %2455 = vst [vmem:[#allocation2 + $0x30] sm:$0xff] %v2391
    %2456 = vst [vmem:[#allocation2 + $0x38] sm:$0xff] %v2392
    %2457 = vst [vmem:[#allocation2 + $0x40] sm:$0xff] %v2393
    %2458 = vst [vmem:[#allocation2 + $0x48] sm:$0xff] %v2394
    %2459 = vst [vmem:[#allocation2 + $0x50] sm:$0xff] %v2395
    %2460 = vst [vmem:[#allocation2 + $0x58] sm:$0xff] %v2396
    %2461 = vst [vmem:[#allocation2 + $0x60] sm:$0xff] %v2397
    %2462 = vst [vmem:[#allocation2 + $0x68] sm:$0xff] %v2398
    %2463 = vst [vmem:[#allocation2 + $0x70] sm:$0xff] %v2399
    %2464 = vst [vmem:[#allocation2 + $0x78] sm:$0xff] %v2400
    %2465 = vst [vmem:[#allocation2 + $0x80] sm:$0xff] %v2401
    %2466 = vst [vmem:[#allocation2 + $0x88] sm:$0xff] %v2402
    %2467 = vst [vmem:[#allocation2 + $0x90] sm:$0xff] %v2403
    %2468 = vst [vmem:[#allocation2 + $0x98] sm:$0xff] %v2404
    %2469 = vst [vmem:[#allocation2 + $0xa0] sm:$0xff] %v2405
    %2470 = vst [vmem:[#allocation2 + $0xa8] sm:$0xff] %v2406
    %2471 = vst [vmem:[#allocation2 + $0xb0] sm:$0xff] %v2407
    %2472 = vst [vmem:[#allocation2 + $0xb8] sm:$0xff] %v2408
    %2473 = vst [vmem:[#allocation2 + $0xc0] sm:$0xff] %v2409
    %2474 = vst [vmem:[#allocation2 + $0xc8] sm:$0xff] %v2410
    %2475 = vst [vmem:[#allocation2 + $0xd0] sm:$0xff] %v2411
    %2476 = vst [vmem:[#allocation2 + $0xd8] sm:$0xff] %v2412
    %2477 = vst [vmem:[#allocation2 + $0xe0] sm:$0xff] %v2413
    %2478 = vst [vmem:[#allocation2 + $0xe8] sm:$0xff] %v2414
    %2479 = vst [vmem:[#allocation2 + $0xf0] sm:$0xff] %v2415
    %2480 = vst [vmem:[#allocation2 + $0xf8] sm:$0xff] %v2416
    %2481 = vst [vmem:[#allocation2 + $0x100] sm:$0xff] %v2417
    %2482 = vst [vmem:[#allocation2 + $0x108] sm:$0xff] %v2418
    %2483 = vst [vmem:[#allocation2 + $0x110] sm:$0xff] %v2419
    %2484 = vst [vmem:[#allocation2 + $0x118] sm:$0xff] %v2420
    %2485 = vst [vmem:[#allocation2 + $0x120] sm:$0xff] %v2421
    %2486 = vst [vmem:[#allocation2 + $0x128] sm:$0xff] %v2422
    %2487 = vst [vmem:[#allocation2 + $0x130] sm:$0xff] %v2423
    %2488 = vst [vmem:[#allocation2 + $0x138] sm:$0xff] %v2424
    %2489 = vst [vmem:[#allocation2 + $0x140] sm:$0xff] %v2425
    %2490 = vst [vmem:[#allocation2 + $0x148] sm:$0xff] %v2426
    %2491 = vst [vmem:[#allocation2 + $0x150] sm:$0xff] %v2427
    %2492 = vst [vmem:[#allocation2 + $0x158] sm:$0xff] %v2428
    %2493 = vst [vmem:[#allocation2 + $0x160] sm:$0xff] %v2429
    %2494 = vst [vmem:[#allocation2 + $0x168] sm:$0xff] %v2430
    %2495 = vst [vmem:[#allocation2 + $0x170] sm:$0xff] %v2431
    %2496 = vst [vmem:[#allocation2 + $0x178] sm:$0xff] %v2432
    %2497 = vst [vmem:[#allocation2 + $0x180] sm:$0xff] %v2433
    %2498 = vst [vmem:[#allocation2 + $0x188] sm:$0xff] %v2434
    %2499 = vst [vmem:[#allocation2 + $0x190] sm:$0xff] %v2435
    %2500 = vst [vmem:[#allocation2 + $0x198] sm:$0xff] %v2436
    %2501 = vst [vmem:[#allocation2 + $0x1a0] sm:$0xff] %v2437
    %2502 = vst [vmem:[#allocation2 + $0x1a8] sm:$0xff] %v2438
    %2503 = vst [vmem:[#allocation2 + $0x1b0] sm:$0xff] %v2439
    %2504 = vst [vmem:[#allocation2 + $0x1b8] sm:$0xff] %v2440
    %2505 = vst [vmem:[#allocation2 + $0x1c0] sm:$0xff] %v2441
    %2506 = vst [vmem:[#allocation2 + $0x1c8] sm:$0xff] %v2442
    %2507 = vst [vmem:[#allocation2 + $0x1d0] sm:$0xff] %v2443
    %2508 = vst [vmem:[#allocation2 + $0x1d8] sm:$0xff] %v2444
    %2509 = vst [vmem:[#allocation2 + $0x1e0] sm:$0xff] %v2445
    %2510 = vst [vmem:[#allocation2 + $0x1e8] sm:$0xff] %v2446
    %2511 = vst [vmem:[#allocation2 + $0x1f0] sm:$0xff] %v2447
    %2512 = vst [vmem:[#allocation2 + $0x1f8] sm:$0xff] %v2448
    // Predicated region
    $region38: #{tpu_custom_call.1} parent=1 // pred_check
      %p2513 = pneg %p63
    $region39: #{tpu_custom_call.1} parent=1 // pred_check_branch
      %2515 = sbr.rel (%p2513) target = $region41
    $region40: #{tpu_custom_call.1} parent=1 // pred_region
      %v2516 = vld [vmem:[#allocation2] sm:$0xff]
      %v2517 = vld [vmem:[#allocation2 + $0x8] sm:$0xff]
      %v2518 = vld [vmem:[#allocation2 + $0x10] sm:$0xff]
      %v2519 = vld [vmem:[#allocation2 + $0x18] sm:$0xff]
      %v2520 = vld [vmem:[#allocation2 + $0x20] sm:$0xff]
      %v2521 = vld [vmem:[#allocation2 + $0x28] sm:$0xff]
      %v2522 = vld [vmem:[#allocation2 + $0x30] sm:$0xff]
      %v2523 = vld [vmem:[#allocation2 + $0x38] sm:$0xff]
      %v2524 = vld [vmem:[#allocation2 + $0x40] sm:$0xff]
      %v2525 = vld [vmem:[#allocation2 + $0x48] sm:$0xff]
      %v2526 = vld [vmem:[#allocation2 + $0x50] sm:$0xff]
      %v2527 = vld [vmem:[#allocation2 + $0x58] sm:$0xff]
      %v2528 = vld [vmem:[#allocation2 + $0x60] sm:$0xff]
      %v2529 = vld [vmem:[#allocation2 + $0x68] sm:$0xff]
      %v2530 = vld [vmem:[#allocation2 + $0x70] sm:$0xff]
      %v2531 = vld [vmem:[#allocation2 + $0x78] sm:$0xff]
      %v2532 = vld [vmem:[#allocation2 + $0x80] sm:$0xff]
      %v2533 = vld [vmem:[#allocation2 + $0x88] sm:$0xff]
      %v2534 = vld [vmem:[#allocation2 + $0x90] sm:$0xff]
      %v2535 = vld [vmem:[#allocation2 + $0x98] sm:$0xff]
      %v2536 = vld [vmem:[#allocation2 + $0xa0] sm:$0xff]
      %v2537 = vld [vmem:[#allocation2 + $0xa8] sm:$0xff]
      %v2538 = vld [vmem:[#allocation2 + $0xb0] sm:$0xff]
      %v2539 = vld [vmem:[#allocation2 + $0xb8] sm:$0xff]
      %v2540 = vld [vmem:[#allocation2 + $0xc0] sm:$0xff]
      %v2541 = vld [vmem:[#allocation2 + $0xc8] sm:$0xff]
      %v2542 = vld [vmem:[#allocation2 + $0xd0] sm:$0xff]
      %v2543 = vld [vmem:[#allocation2 + $0xd8] sm:$0xff]
      %v2544 = vld [vmem:[#allocation2 + $0xe0] sm:$0xff]
      %v2545 = vld [vmem:[#allocation2 + $0xe8] sm:$0xff]
      %v2546 = vld [vmem:[#allocation2 + $0xf0] sm:$0xff]
      %v2547 = vld [vmem:[#allocation2 + $0xf8] sm:$0xff]
      %v2548 = vld [vmem:[#allocation2 + $0x100] sm:$0xff]
      %v2549 = vld [vmem:[#allocation2 + $0x108] sm:$0xff]
      %v2550 = vld [vmem:[#allocation2 + $0x110] sm:$0xff]
      %v2551 = vld [vmem:[#allocation2 + $0x118] sm:$0xff]
      %v2552 = vld [vmem:[#allocation2 + $0x120] sm:$0xff]
      %v2553 = vld [vmem:[#allocation2 + $0x128] sm:$0xff]
      %v2554 = vld [vmem:[#allocation2 + $0x130] sm:$0xff]
      %v2555 = vld [vmem:[#allocation2 + $0x138] sm:$0xff]
      %v2556 = vld [vmem:[#allocation2 + $0x140] sm:$0xff]
      %v2557 = vld [vmem:[#allocation2 + $0x148] sm:$0xff]
      %v2558 = vld [vmem:[#allocation2 + $0x150] sm:$0xff]
      %v2559 = vld [vmem:[#allocation2 + $0x158] sm:$0xff]
      %v2560 = vld [vmem:[#allocation2 + $0x160] sm:$0xff]
      %v2561 = vld [vmem:[#allocation2 + $0x168] sm:$0xff]
      %v2562 = vld [vmem:[#allocation2 + $0x170] sm:$0xff]
      %v2563 = vld [vmem:[#allocation2 + $0x178] sm:$0xff]
      %v2564 = vld [vmem:[#allocation2 + $0x180] sm:$0xff]
      %v2565 = vld [vmem:[#allocation2 + $0x188] sm:$0xff]
      %v2566 = vld [vmem:[#allocation2 + $0x190] sm:$0xff]
      %v2567 = vld [vmem:[#allocation2 + $0x198] sm:$0xff]
      %v2568 = vld [vmem:[#allocation2 + $0x1a0] sm:$0xff]
      %v2569 = vld [vmem:[#allocation2 + $0x1a8] sm:$0xff]
      %v2570 = vld [vmem:[#allocation2 + $0x1b0] sm:$0xff]
      %v2571 = vld [vmem:[#allocation2 + $0x1b8] sm:$0xff]
      %v2572 = vld [vmem:[#allocation2 + $0x1c0] sm:$0xff]
      %v2573 = vld [vmem:[#allocation2 + $0x1c8] sm:$0xff]
      %v2574 = vld [vmem:[#allocation2 + $0x1d0] sm:$0xff]
      %v2575 = vld [vmem:[#allocation2 + $0x1d8] sm:$0xff]
      %v2576 = vld [vmem:[#allocation2 + $0x1e0] sm:$0xff]
      %v2577 = vld [vmem:[#allocation2 + $0x1e8] sm:$0xff]
      %v2578 = vld [vmem:[#allocation2 + $0x1f0] sm:$0xff]
      %v2579 = vld [vmem:[#allocation2 + $0x1f8] sm:$0xff]
      %v2580 = vld [vmem:[%s4] sm:$0x1]
      %v2582 = vlaneseq
      %v2583 = vshrl.u32 %v2582, 7
      %v2584 = vsub.s32 0, %v2583
      %v2585 = vrot.slane %v2580, %v2584
      %v2587 = vadd.f32 %v2516, %v2585
      %v2588 = vadd.f32 %v2517, %v2585
      %v2589 = vadd.f32 %v2518, %v2585
      %v2590 = vadd.f32 %v2519, %v2585
      %v2591 = vadd.f32 %v2520, %v2585
      %v2592 = vadd.f32 %v2521, %v2585
      %v2593 = vadd.f32 %v2522, %v2585
      %v2594 = vadd.f32 %v2523, %v2585
      %v2595 = vadd.f32 %v2524, %v2585
      %v2596 = vadd.f32 %v2525, %v2585
      %v2597 = vadd.f32 %v2526, %v2585
      %v2598 = vadd.f32 %v2527, %v2585
      %v2599 = vadd.f32 %v2528, %v2585
      %v2600 = vadd.f32 %v2529, %v2585
      %v2601 = vadd.f32 %v2530, %v2585
      %v2602 = vadd.f32 %v2531, %v2585
      %v2603 = vadd.f32 %v2532, %v2585
      %v2604 = vadd.f32 %v2533, %v2585
      %v2605 = vadd.f32 %v2534, %v2585
      %v2606 = vadd.f32 %v2535, %v2585
      %v2607 = vadd.f32 %v2536, %v2585
      %v2608 = vadd.f32 %v2537, %v2585
      %v2609 = vadd.f32 %v2538, %v2585
      %v2610 = vadd.f32 %v2539, %v2585
      %v2611 = vadd.f32 %v2540, %v2585
      %v2612 = vadd.f32 %v2541, %v2585
      %v2613 = vadd.f32 %v2542, %v2585
      %v2614 = vadd.f32 %v2543, %v2585
      %v2615 = vadd.f32 %v2544, %v2585
      %v2616 = vadd.f32 %v2545, %v2585
      %v2617 = vadd.f32 %v2546, %v2585
      %v2618 = vadd.f32 %v2547, %v2585
      %v2619 = vadd.f32 %v2548, %v2585
      %v2620 = vadd.f32 %v2549, %v2585
      %v2621 = vadd.f32 %v2550, %v2585
      %v2622 = vadd.f32 %v2551, %v2585
      %v2623 = vadd.f32 %v2552, %v2585
      %v2624 = vadd.f32 %v2553, %v2585
      %v2625 = vadd.f32 %v2554, %v2585
      %v2626 = vadd.f32 %v2555, %v2585
      %v2627 = vadd.f32 %v2556, %v2585
      %v2628 = vadd.f32 %v2557, %v2585
      %v2629 = vadd.f32 %v2558, %v2585
      %v2630 = vadd.f32 %v2559, %v2585
      %v2631 = vadd.f32 %v2560, %v2585
      %v2632 = vadd.f32 %v2561, %v2585
      %v2633 = vadd.f32 %v2562, %v2585
      %v2634 = vadd.f32 %v2563, %v2585
      %v2635 = vadd.f32 %v2564, %v2585
      %v2636 = vadd.f32 %v2565, %v2585
      %v2637 = vadd.f32 %v2566, %v2585
      %v2638 = vadd.f32 %v2567, %v2585
      %v2639 = vadd.f32 %v2568, %v2585
      %v2640 = vadd.f32 %v2569, %v2585
      %v2641 = vadd.f32 %v2570, %v2585
      %v2642 = vadd.f32 %v2571, %v2585
      %v2643 = vadd.f32 %v2572, %v2585
      %v2644 = vadd.f32 %v2573, %v2585
      %v2645 = vadd.f32 %v2574, %v2585
      %v2646 = vadd.f32 %v2575, %v2585
      %v2647 = vadd.f32 %v2576, %v2585
      %v2648 = vadd.f32 %v2577, %v2585
      %v2649 = vadd.f32 %v2578, %v2585
      %v2650 = vadd.f32 %v2579, %v2585
      %2651 = vst [vmem:[#allocation9] sm:$0xff] %v2587
      %2652 = vst [vmem:[#allocation9 + $0x8] sm:$0xff] %v2588
      %2653 = vst [vmem:[#allocation9 + $0x10] sm:$0xff] %v2589
      %2654 = vst [vmem:[#allocation9 + $0x18] sm:$0xff] %v2590
      %2655 = vst [vmem:[#allocation9 + $0x20] sm:$0xff] %v2591
      %2656 = vst [vmem:[#allocation9 + $0x28] sm:$0xff] %v2592
      %2657 = vst [vmem:[#allocation9 + $0x30] sm:$0xff] %v2593
      %2658 = vst [vmem:[#allocation9 + $0x38] sm:$0xff] %v2594
      %2659 = vst [vmem:[#allocation9 + $0x40] sm:$0xff] %v2595
      %2660 = vst [vmem:[#allocation9 + $0x48] sm:$0xff] %v2596
      %2661 = vst [vmem:[#allocation9 + $0x50] sm:$0xff] %v2597
      %2662 = vst [vmem:[#allocation9 + $0x58] sm:$0xff] %v2598
      %2663 = vst [vmem:[#allocation9 + $0x60] sm:$0xff] %v2599
      %2664 = vst [vmem:[#allocation9 + $0x68] sm:$0xff] %v2600
      %2665 = vst [vmem:[#allocation9 + $0x70] sm:$0xff] %v2601
      %2666 = vst [vmem:[#allocation9 + $0x78] sm:$0xff] %v2602
      %2667 = vst [vmem:[#allocation9 + $0x80] sm:$0xff] %v2603
      %2668 = vst [vmem:[#allocation9 + $0x88] sm:$0xff] %v2604
      %2669 = vst [vmem:[#allocation9 + $0x90] sm:$0xff] %v2605
      %2670 = vst [vmem:[#allocation9 + $0x98] sm:$0xff] %v2606
      %2671 = vst [vmem:[#allocation9 + $0xa0] sm:$0xff] %v2607
      %2672 = vst [vmem:[#allocation9 + $0xa8] sm:$0xff] %v2608
      %2673 = vst [vmem:[#allocation9 + $0xb0] sm:$0xff] %v2609
      %2674 = vst [vmem:[#allocation9 + $0xb8] sm:$0xff] %v2610
      %2675 = vst [vmem:[#allocation9 + $0xc0] sm:$0xff] %v2611
      %2676 = vst [vmem:[#allocation9 + $0xc8] sm:$0xff] %v2612
      %2677 = vst [vmem:[#allocation9 + $0xd0] sm:$0xff] %v2613
      %2678 = vst [vmem:[#allocation9 + $0xd8] sm:$0xff] %v2614
      %2679 = vst [vmem:[#allocation9 + $0xe0] sm:$0xff] %v2615
      %2680 = vst [vmem:[#allocation9 + $0xe8] sm:$0xff] %v2616
      %2681 = vst [vmem:[#allocation9 + $0xf0] sm:$0xff] %v2617
      %2682 = vst [vmem:[#allocation9 + $0xf8] sm:$0xff] %v2618
      %2683 = vst [vmem:[#allocation9 + $0x100] sm:$0xff] %v2619
      %2684 = vst [vmem:[#allocation9 + $0x108] sm:$0xff] %v2620
      %2685 = vst [vmem:[#allocation9 + $0x110] sm:$0xff] %v2621
      %2686 = vst [vmem:[#allocation9 + $0x118] sm:$0xff] %v2622
      %2687 = vst [vmem:[#allocation9 + $0x120] sm:$0xff] %v2623
      %2688 = vst [vmem:[#allocation9 + $0x128] sm:$0xff] %v2624
      %2689 = vst [vmem:[#allocation9 + $0x130] sm:$0xff] %v2625
      %2690 = vst [vmem:[#allocation9 + $0x138] sm:$0xff] %v2626
      %2691 = vst [vmem:[#allocation9 + $0x140] sm:$0xff] %v2627
      %2692 = vst [vmem:[#allocation9 + $0x148] sm:$0xff] %v2628
      %2693 = vst [vmem:[#allocation9 + $0x150] sm:$0xff] %v2629
      %2694 = vst [vmem:[#allocation9 + $0x158] sm:$0xff] %v2630
      %2695 = vst [vmem:[#allocation9 + $0x160] sm:$0xff] %v2631
      %2696 = vst [vmem:[#allocation9 + $0x168] sm:$0xff] %v2632
      %2697 = vst [vmem:[#allocation9 + $0x170] sm:$0xff] %v2633
      %2698 = vst [vmem:[#allocation9 + $0x178] sm:$0xff] %v2634
      %2699 = vst [vmem:[#allocation9 + $0x180] sm:$0xff] %v2635
      %2700 = vst [vmem:[#allocation9 + $0x188] sm:$0xff] %v2636
      %2701 = vst [vmem:[#allocation9 + $0x190] sm:$0xff] %v2637
      %2702 = vst [vmem:[#allocation9 + $0x198] sm:$0xff] %v2638
      %2703 = vst [vmem:[#allocation9 + $0x1a0] sm:$0xff] %v2639
      %2704 = vst [vmem:[#allocation9 + $0x1a8] sm:$0xff] %v2640
      %2705 = vst [vmem:[#allocation9 + $0x1b0] sm:$0xff] %v2641
      %2706 = vst [vmem:[#allocation9 + $0x1b8] sm:$0xff] %v2642
      %2707 = vst [vmem:[#allocation9 + $0x1c0] sm:$0xff] %v2643
      %2708 = vst [vmem:[#allocation9 + $0x1c8] sm:$0xff] %v2644
      %2709 = vst [vmem:[#allocation9 + $0x1d0] sm:$0xff] %v2645
      %2710 = vst [vmem:[#allocation9 + $0x1d8] sm:$0xff] %v2646
      %2711 = vst [vmem:[#allocation9 + $0x1e0] sm:$0xff] %v2647
      %2712 = vst [vmem:[#allocation9 + $0x1e8] sm:$0xff] %v2648
      %2713 = vst [vmem:[#allocation9 + $0x1f0] sm:$0xff] %v2649
      %2714 = vst [vmem:[#allocation9 + $0x1f8] sm:$0xff] %v2650
    $region41: #{tpu_custom_call.1} parent=1 // pred_fallthru
      _
    // Predicated region
    $region42: #{tpu_custom_call.1} parent=1 // pred_check
      _
    $region43: #{tpu_custom_call.1} parent=1 // pred_check_branch
      %2716 = sbr.rel (0) target = $region45
    $region44: #{tpu_custom_call.1} parent=1 // pred_region
      %s2718 = ssub.s32 8192, 8192
      %2719 = vsyncadd [#allocation5], %s2718
      %s2720 = sshll.u32 [#allocation9], 4
      %s2721 = int_to_ptr.vmem [resolvable:$true] %s2720
      %2726 = dma.vmem_to_hbm [thread:$0]  %s2721, 8192, %s5, [#allocation5], 128, 128, 8
    $region45: #{tpu_custom_call.1} parent=1 // pred_fallthru
      _
    // Predicated region
    $region46: #{tpu_custom_call.1} parent=1 // pred_check
      _
    $region47: #{tpu_custom_call.1} parent=1 // pred_check_branch
      %2728 = sbr.rel (0) target = $region49
    $region48: #{tpu_custom_call.1} parent=1 // pred_region
      %2729 = dma.done [#allocation5], 8192
    $region49: #{tpu_custom_call.1} parent=1 // pred_fallthru
      _
    %2730 = vsyncpa [#allocation4], 1
    %2731 = vsyncpa [#allocation7], 1
    %2732 = vsyncpa [#allocation5], 1

</llo_original>
